<compile_context>
chip_gen: v6e
topology: v6e:2x2x1
jax: 0.10.0
libtpu: 0.0.40
codegen_flags: <defaults>
</compile_context>

<pallas_src>
import math

import jax
import jax.numpy as jnp
from jax.experimental import pallas as pl
from jax.experimental.pallas import tpu as pltpu

# ---- model / problem sizes (small, consistent with the module) --------------
B, TX, DIN = 2, 8, 16            # batch, sequence length, input feature dim
H, N_HEAD, N_LAYERS = 32, 4, 2   # size_hidden, n_head, n_layers
WINDOW = 8                       # window_size (>= TX)
DOUT = 32                        # Dout (defaults to size_hidden in the module)
HD = H // N_HEAD
LN_EPS = 1e-5                    # torch.nn.LayerNorm default eps
LANES = 128                      # every packed buffer is padded to 128 lanes

# ---- packed bf16 weight-buffer row offsets ([W_ROWS, 128]) -------------------
# [xte_w (DIN rows)] then per layer [qkv_w (H) | c_proj_w (H) | fc1_w (H) | fc2_w (4H)]
# then [out_w (H rows)].
W_STRIDE = 7 * H
W_L0 = DIN
W_OUT = DIN + N_LAYERS * W_STRIDE
W_ROWS = W_OUT + H

# ---- f32 vector rows appended to the activation slab -------------------------
# per layer: ln1_g, ln1_b, qkv_b, cproj_b, ln3_g, ln3_b, fc1_b, fc2_b  (8 rows)
# final:     lnf_g, lnf_b                                              (2 rows)
N_VEC_ROWS = 8 * N_LAYERS + 2


def _layernorm(x, g, b):
    # single-pass statistics: sum(x) and sum(x*x) carry no mutual dependency,
    # so both cross-lane reductions can issue back-to-back.
    inv_n = 1.0 / x.shape[-1]
    s1 = jnp.sum(x, axis=-1, keepdims=True)
    s2 = jnp.sum(x * x, axis=-1, keepdims=True)
    mu = s1 * inv_n
    var = s2 * inv_n - mu * mu
    return (x - mu) * jax.lax.rsqrt(var + LN_EPS) * g + b


def _new_gelu(x):
    # NewGELU: 0.5 * x * (1 + tanh(sqrt(2/pi) * (x + 0.044715 x^3)))
    return 0.5 * x * (1.0 + jnp.tanh(math.sqrt(2.0 / math.pi) * (x + 0.044715 * x ** 3)))


def _make_kernel(bt):
    a_bias, a_posb, a_vec = bt, 2 * bt, 3 * bt
    f32, bf16 = jnp.float32, jnp.bfloat16

    def mm(a, w):                 # bf16 MXU operands, f32 accumulation
        return jnp.dot(a.astype(bf16), w.astype(bf16), preferred_element_type=f32)

    def heads(m):                 # [bt, H] -> [N_HEAD, bt, HD] (head-major lane blocks)
        return jnp.stack([m[:, hh * HD:(hh + 1) * HD] for hh in range(N_HEAD)], axis=0)

    def kernel(acts_ref, wts_ref, o_ref):
        # acts_ref : f32 [3*bt + N_VEC_ROWS (+pad), 128]
        #   rows [0,bt)     lanes [0,DIN) : flattened batch*time inputs
        #   rows [bt,2bt)   lanes [0,bt)  : additive attention bias (0 / -1e30),
        #                                   block-diag over batch, causal+padding folded
        #   rows [2bt,3bt)  lanes [0,H)   : positional emb + token-emb bias rows
        #   rows [3bt,...)                : per-layer + final bias / LayerNorm rows
        # wts_ref  : bf16 [W_ROWS, 128]   : all matmul weights (Q pre-scaled by 1/sqrt(hd))
        # o_ref    : f32 [bt, 128]        : lane-dense output (logits in lanes [0,DOUT))
        x = acts_ref[0:bt, :DIN]
        bias = acts_ref[a_bias:a_bias + bt, :bt]
        posb = acts_ref[a_posb:a_posb + bt, :H]

        def vec(r, n):
            return acts_ref[a_vec + r:a_vec + r + 1, :n]

        # token embedding (nn.Linear; its bias folded into posb) + positional embedding
        h = mm(x, wts_ref[0:DIN, :H]) + posb

        for l in range(N_LAYERS):
            wb = W_L0 + l * W_STRIDE
            vb = 8 * l
            ln1_g, ln1_b = vec(vb + 0, H), vec(vb + 1, H)
            qkv_b = vec(vb + 2, 3 * H)
            cproj_b = vec(vb + 3, H)
            ln3_g, ln3_b = vec(vb + 4, H), vec(vb + 5, H)
            fc1_b = vec(vb + 6, 4 * H)
            fc2_b = vec(vb + 7, H)

            # ---- CausalBlock: x = ln_1(x); x = x + self_attn(x, x, mask) ----
            # NOTE: the module reassigns x = ln_1(x) BEFORE the residual, so the
            # attention residual really is taken from the post-LayerNorm activation.
            hn = _layernorm(h, ln1_g, ln1_b)
            qkv = mm(hn, wts_ref[wb:wb + H, :3 * H]) + qkv_b            # [bt, 3H]

            q3 = heads(qkv[:, 0:H])                                     # [nh, bt, hd]
            k3 = heads(qkv[:, H:2 * H])
            v3 = heads(qkv[:, 2 * H:3 * H])
            # 1/sqrt(hd) already folded into Q; `bias` carries causal / padding /
            # cross-batch masking and is broadcast over the head axis.
            s = jnp.einsum('htd,hsd->hts', q3.astype(bf16), k3.astype(bf16),
                           preferred_element_type=f32) + bias           # [nh, bt, bt]
            s = s - jnp.max(s, axis=-1, keepdims=True)
            p = jnp.exp(s)
            # fully padded query rows give a uniform softmax here instead of NaN
            # (as torch SDPA would); those rows are padding and ignored downstream.
            p = p / jnp.sum(p, axis=-1, keepdims=True)
            ctx3 = jnp.einsum('hts,hsd->htd', p.astype(bf16), v3.astype(bf16),
                              preferred_element_type=f32)               # [nh, bt, hd]
            ctx = jnp.concatenate([ctx3[hh] for hh in range(N_HEAD)], axis=-1)  # [bt, H]
            attn = mm(ctx, wts_ref[wb + H:wb + 2 * H, :H]) + cproj_b
            h = hn + attn

            # ---- x = x + mlp(ln_3(x)) ----
            hn3 = _layernorm(h, ln3_g, ln3_b)
            m = mm(hn3, wts_ref[wb + 2 * H:wb + 3 * H, :4 * H]) + fc1_b
            m = _new_gelu(m)
            m = mm(m, wts_ref[wb + 3 * H:wb + 7 * H, :H]) + fc2_b
            h = h + m

        # final LayerNorm + output projection (no bias); out_w is zero-padded to
        # 128 lanes so the store is lane-dense (unmasked vst).
        hf = _layernorm(h, vec(8 * N_LAYERS, H), vec(8 * N_LAYERS + 1, H))
        o_ref[...] = mm(hf, wts_ref[W_OUT:W_OUT + H, :])

    return kernel


# ------------------------------------------------------------------------------
# host-side glue: parameter init, packing, mask construction, pallas_call
# ------------------------------------------------------------------------------
def init_params(key):
    ks = iter(jax.random.split(key, 24))
    nrm = lambda shape, scale=0.02: jax.random.normal(next(ks), shape, jnp.float32) * scale
    return dict(
        xte_w=nrm((DIN, H)), xte_b=nrm((H,)),
        xpe=nrm((WINDOW, H)),
        ln1_g=jnp.ones((N_LAYERS, H), jnp.float32), ln1_b=jnp.zeros((N_LAYERS, H), jnp.float32),
        q_w=nrm((N_LAYERS, H, H)), q_b=nrm((N_LAYERS, H)),
        kv_w=nrm((N_LAYERS, H, 2 * H)), kv_b=nrm((N_LAYERS, 2 * H)),
        ap_w=nrm((N_LAYERS, H, H)), ap_b=nrm((N_LAYERS, H)),
        ln3_g=jnp.ones((N_LAYERS, H), jnp.float32), ln3_b=jnp.zeros((N_LAYERS, H), jnp.float32),
        fc1_w=nrm((N_LAYERS, H, 4 * H)), fc1_b=nrm((N_LAYERS, 4 * H)),
        fc2_w=nrm((N_LAYERS, 4 * H, H)), fc2_b=nrm((N_LAYERS, H)),
        lnf_g=jnp.ones((H,), jnp.float32), lnf_b=jnp.zeros((H,), jnp.float32),
        out_w=nrm((H, DOUT)),
    )


def _pad_lanes(m):
    return jnp.pad(m, ((0, 0), (0, LANES - m.shape[1])))


def _vec_row(v):
    return jnp.pad(v, (0, LANES - v.shape[0]))[None, :]


def pack_weights(params):
    """Fuse QKV (+fold attention scale into Q), pack every matmul weight into one
    bf16 [W_ROWS, 128] buffer and every bias/LN vector into f32 [*, 128] rows."""
    scale = 1.0 / math.sqrt(HD)
    qkv_w = jnp.concatenate([params["q_w"] * scale, params["kv_w"]], axis=-1)   # [L, H, 3H]
    qkv_b = jnp.concatenate([params["q_b"] * scale, params["kv_b"]], axis=-1)   # [L, 3H]

    rows = [_pad_lanes(params["xte_w"])]
    for l in range(N_LAYERS):
        rows += [_pad_lanes(qkv_w[l]), _pad_lanes(params["ap_w"][l]),
                 _pad_lanes(params["fc1_w"][l]), _pad_lanes(params["fc2_w"][l])]
    rows.append(_pad_lanes(params["out_w"]))
    wts = jnp.concatenate(rows, axis=0).astype(jnp.bfloat16)                    # [W_ROWS, 128]
    assert wts.shape == (W_ROWS, LANES)

    vrows = []
    for l in range(N_LAYERS):
        vrows += [_vec_row(params["ln1_g"][l]), _vec_row(params["ln1_b"][l]),
                  _vec_row(qkv_b[l]), _vec_row(params["ap_b"][l]),
                  _vec_row(params["ln3_g"][l]), _vec_row(params["ln3_b"][l]),
                  _vec_row(params["fc1_b"][l]), _vec_row(params["fc2_b"][l])]
    vrows += [_vec_row(params["lnf_g"]), _vec_row(params["lnf_b"])]
    vecs = jnp.concatenate(vrows, axis=0)                                       # [N_VEC_ROWS, 128]
    return wts, vecs


def hw_decoder_transformer(x_vals, lengths, params):
    """x_vals: [B, Tx, Din] f32, lengths: [B, 1] int32 -> logits [B, Tx, Dout]."""
    bsz, tx, din = x_vals.shape
    assert tx <= WINDOW and din == DIN
    bt = bsz * tx

    wts, vecs = pack_weights(params)

    # flatten batch*time; block-diagonal additive attention bias combines causal,
    # padding and cross-batch masking so the flattened batch stays independent.
    # (-1e30 is safe in f32; exp underflows to 0.)
    x_flat = x_vals.reshape(bt, din)
    batch_ids = jnp.repeat(jnp.arange(bsz), tx)
    pos_ids = jnp.tile(jnp.arange(tx), bsz)
    valid = pos_ids < jnp.repeat(lengths.reshape(bsz), tx)
    mask = ((batch_ids[:, None] == batch_ids[None, :])
            & (pos_ids[:, None] >= pos_ids[None, :])
            & valid[:, None] & valid[None, :])
    attn_bias = jnp.where(mask, 0.0, -1e30).astype(jnp.float32)

    # positional embedding rows + token-embedding bias, tiled over the batch
    posb = jnp.tile(params["xpe"][:tx] + params["xte_b"][None, :], (bsz, 1))

    # single f32 activation slab: inputs | attention bias | pos rows | bias/LN rows
    acts = jnp.concatenate([_pad_lanes(x_flat), _pad_lanes(attn_bias),
                            _pad_lanes(posb), vecs], axis=0)
    acts = jnp.pad(acts, ((0, (-acts.shape[0]) % 8), (0, 0)))   # sublane-align rows

    kernel = _make_kernel(bt)
    args = (acts, wts)

    # advisory cost hint (the kernel is tiny; helps XLA scheduling around it)
    flops = 2 * bt * DIN * H + 2 * bt * H * LANES
    flops += N_LAYERS * (2 * bt * H * 3 * H + 4 * N_HEAD * bt * bt * HD
                         + 2 * bt * H * H + 2 * bt * H * 4 * H + 2 * bt * 4 * H * H)
    transcendentals = N_LAYERS * (N_HEAD * bt * bt + bt * 4 * H + 3 * bt) + bt
    bytes_accessed = int(acts.size) * 4 + int(wts.size) * 2 + bt * LANES * 4

    out = pl.pallas_call(
        kernel,
        out_shape=jax.ShapeDtypeStruct((bt, LANES), jnp.float32),
        grid=(1,),  # single step: the whole (tiny) problem lives in VMEM
        in_specs=[pl.BlockSpec(a.shape, lambda i: (0, 0)) for a in args],
        out_specs=pl.BlockSpec((bt, LANES), lambda i: (0, 0)),
        compiler_params=pltpu.CompilerParams(dimension_semantics=("arbitrary",)),
        cost_estimate=pl.CostEstimate(flops=flops, transcendentals=transcendentals,
                                      bytes_accessed=bytes_accessed),
    )(*args)
    return out[:, :DOUT].reshape(bsz, tx, DOUT)


if __name__ == "__main__":
    key = jax.random.PRNGKey(0)
    kx, kp = jax.random.split(key)
    x_vals = jax.random.normal(kx, (B, TX, DIN), jnp.float32)   # SequenceData.vals
    lengths = jnp.array([[TX], [5]], dtype=jnp.int32)           # SequenceData.lengths [B, 1]
    params = init_params(kp)

    logits = hw_decoder_transformer(x_vals, lengths, params)
    jax.block_until_ready(logits)
    assert logits.shape == (B, TX, DOUT)
    assert bool(jnp.all(jnp.isfinite(logits)))
    print("KERNEL_OK")
</pallas_src>

<mosaic_0001>
module attributes {stable_mosaic.version = 11 : i64} {
  func.func @kernel(%arg0: i32, %arg1: memref<72x128xf32, #tpu.memory_space<vmem>>, %arg2: memref<496x128xbf16, #tpu.memory_space<vmem>>, %arg3: memref<16x128xf32, #tpu.memory_space<vmem>>) attributes {dimension_semantics = [#tpu.dimension_semantics<arbitrary>], iteration_bounds = array<i64: 1>, scalar_prefetch = 0 : i64, scratch_operands = 0 : i64, tpu.core_type = #tpu.core_type<tc>, window_params = [{pipeline_mode = #tpu.pipeline_mode<synchronous>, transform_indices = @transform_0, window_bounds = array<i64: 72, 128>}, {pipeline_mode = #tpu.pipeline_mode<synchronous>, transform_indices = @transform_1, window_bounds = array<i64: 496, 128>}, {pipeline_mode = #tpu.pipeline_mode<synchronous>, transform_indices = @transform_2, window_bounds = array<i64: 16, 128>}]} {
    %c0 = arith.constant 0 : index
    %c0_0 = arith.constant 0 : index
    %0 = vector.load %arg1[%c0, %c0_0] : memref<72x128xf32, #tpu.memory_space<vmem>>, vector<16x16xf32>
    %c16 = arith.constant 16 : index
    %c0_1 = arith.constant 0 : index
    %1 = vector.load %arg1[%c16, %c0_1] : memref<72x128xf32, #tpu.memory_space<vmem>>, vector<16x16xf32>
    %c32 = arith.constant 32 : index
    %c0_2 = arith.constant 0 : index
    %2 = vector.load %arg1[%c32, %c0_2] : memref<72x128xf32, #tpu.memory_space<vmem>>, vector<16x32xf32>
    %c0_3 = arith.constant 0 : index
    %c0_4 = arith.constant 0 : index
    %3 = vector.load %arg2[%c0_3, %c0_4] : memref<496x128xbf16, #tpu.memory_space<vmem>>, vector<16x32xbf16>
    %4 = arith.truncf %0 : vector<16x16xf32> to vector<16x16xbf16>
    %cst = arith.constant dense<0.000000e+00> : vector<16x32xf32>
    %5 = tpu.matmul %4, %3, %cst {dimension_numbers = #tpu.dot_dimension_numbers<[1], [0], [0], [1], [0, 0, 1, 1], [], []>} : vector<16x16xbf16>, vector<16x32xbf16>, vector<16x32xf32> -> vector<16x32xf32>
    %6 = arith.addf %5, %2 : vector<16x32xf32>
    %c48 = arith.constant 48 : index
    %c0_5 = arith.constant 0 : index
    %7 = vector.load %arg1[%c48, %c0_5] : memref<72x128xf32, #tpu.memory_space<vmem>>, vector<1x32xf32>
    %c49 = arith.constant 49 : index
    %c0_6 = arith.constant 0 : index
    %8 = vector.load %arg1[%c49, %c0_6] : memref<72x128xf32, #tpu.memory_space<vmem>>, vector<1x32xf32>
    %c50 = arith.constant 50 : index
    %c0_7 = arith.constant 0 : index
    %9 = vector.load %arg1[%c50, %c0_7] : memref<72x128xf32, #tpu.memory_space<vmem>>, vector<1x96xf32>
    %c51 = arith.constant 51 : index
    %c0_8 = arith.constant 0 : index
    %10 = vector.load %arg1[%c51, %c0_8] : memref<72x128xf32, #tpu.memory_space<vmem>>, vector<1x32xf32>
    %c52 = arith.constant 52 : index
    %c0_9 = arith.constant 0 : index
    %11 = vector.load %arg1[%c52, %c0_9] : memref<72x128xf32, #tpu.memory_space<vmem>>, vector<1x32xf32>
    %c53 = arith.constant 53 : index
    %c0_10 = arith.constant 0 : index
    %12 = vector.load %arg1[%c53, %c0_10] : memref<72x128xf32, #tpu.memory_space<vmem>>, vector<1x32xf32>
    %c54 = arith.constant 54 : index
    %c0_11 = arith.constant 0 : index
    %13 = vector.load %arg1[%c54, %c0_11] : memref<72x128xf32, #tpu.memory_space<vmem>>, vector<1x128xf32>
    %c55 = arith.constant 55 : index
    %c0_12 = arith.constant 0 : index
    %14 = vector.load %arg1[%c55, %c0_12] : memref<72x128xf32, #tpu.memory_space<vmem>>, vector<1x32xf32>
    %cst_13 = arith.constant dense<0.000000e+00> : vector<16xf32>
    %15 = vector.multi_reduction <add>, %6, %cst_13 [1] : vector<16x32xf32> to vector<16xf32>
    %16 = vector.shape_cast %15 : vector<16xf32> to vector<16x1xf32>
    %17 = arith.mulf %6, %6 : vector<16x32xf32>
    %cst_14 = arith.constant dense<0.000000e+00> : vector<16xf32>
    %18 = vector.multi_reduction <add>, %17, %cst_14 [1] : vector<16x32xf32> to vector<16xf32>
    %19 = vector.shape_cast %18 : vector<16xf32> to vector<16x1xf32>
    %cst_15 = arith.constant 3.125000e-02 : f32
    %20 = vector.broadcast %cst_15 : f32 to vector<16x1xf32>
    %21 = arith.mulf %16, %20 : vector<16x1xf32>
    %cst_16 = arith.constant 3.125000e-02 : f32
    %22 = vector.broadcast %cst_16 : f32 to vector<16x1xf32>
    %23 = arith.mulf %19, %22 : vector<16x1xf32>
    %24 = arith.mulf %21, %21 : vector<16x1xf32>
    %25 = arith.subf %23, %24 : vector<16x1xf32>
    %26 = vector.broadcast %21 : vector<16x1xf32> to vector<16x32xf32>
    %27 = arith.subf %6, %26 : vector<16x32xf32>
    %cst_17 = arith.constant 9.99999974E-6 : f32
    %28 = vector.broadcast %cst_17 : f32 to vector<16x1xf32>
    %29 = arith.addf %25, %28 : vector<16x1xf32>
    %30 = math.rsqrt %29 : vector<16x1xf32>
    %31 = vector.broadcast %30 : vector<16x1xf32> to vector<16x32xf32>
    %32 = arith.mulf %27, %31 : vector<16x32xf32>
    %33 = vector.broadcast %7 : vector<1x32xf32> to vector<16x32xf32>
    %34 = arith.mulf %32, %33 : vector<16x32xf32>
    %35 = vector.broadcast %8 : vector<1x32xf32> to vector<16x32xf32>
    %36 = arith.addf %34, %35 : vector<16x32xf32>
    %c16_18 = arith.constant 16 : index
    %c0_19 = arith.constant 0 : index
    %37 = vector.load %arg2[%c16_18, %c0_19] : memref<496x128xbf16, #tpu.memory_space<vmem>>, vector<32x96xbf16>
    %38 = arith.truncf %36 : vector<16x32xf32> to vector<16x32xbf16>
    %cst_20 = arith.constant dense<0.000000e+00> : vector<16x96xf32>
    %39 = tpu.matmul %38, %37, %cst_20 {dimension_numbers = #tpu.dot_dimension_numbers<[1], [0], [0], [1], [0, 0, 1, 1], [], []>} : vector<16x32xbf16>, vector<32x96xbf16>, vector<16x96xf32> -> vector<16x96xf32>
    %40 = vector.broadcast %9 : vector<1x96xf32> to vector<16x96xf32>
    %41 = arith.addf %39, %40 : vector<16x96xf32>
    %42 = vector.extract_strided_slice %41 {offsets = [0, 0], sizes = [16, 32], strides = [1, 1]} : vector<16x96xf32> to vector<16x32xf32>
    %43 = vector.extract_strided_slice %42 {offsets = [0, 0], sizes = [16, 8], strides = [1, 1]} : vector<16x32xf32> to vector<16x8xf32>
    %44 = vector.extract_strided_slice %42 {offsets = [0, 8], sizes = [16, 8], strides = [1, 1]} : vector<16x32xf32> to vector<16x8xf32>
    %45 = vector.extract_strided_slice %42 {offsets = [0, 16], sizes = [16, 8], strides = [1, 1]} : vector<16x32xf32> to vector<16x8xf32>
    %46 = vector.extract_strided_slice %42 {offsets = [0, 24], sizes = [16, 8], strides = [1, 1]} : vector<16x32xf32> to vector<16x8xf32>
    %47 = vector.shape_cast %43 : vector<16x8xf32> to vector<1x16x8xf32>
    %48 = vector.shape_cast %44 : vector<16x8xf32> to vector<1x16x8xf32>
    %49 = vector.shape_cast %45 : vector<16x8xf32> to vector<1x16x8xf32>
    %50 = vector.shape_cast %46 : vector<16x8xf32> to vector<1x16x8xf32>
    %51 = tpu.concatenate %47, %48, %49, %50 in 0 : vector<1x16x8xf32>, vector<1x16x8xf32>, vector<1x16x8xf32>, vector<1x16x8xf32> -> vector<4x16x8xf32>
    %52 = vector.extract_strided_slice %41 {offsets = [0, 32], sizes = [16, 32], strides = [1, 1]} : vector<16x96xf32> to vector<16x32xf32>
    %53 = vector.extract_strided_slice %52 {offsets = [0, 0], sizes = [16, 8], strides = [1, 1]} : vector<16x32xf32> to vector<16x8xf32>
    %54 = vector.extract_strided_slice %52 {offsets = [0, 8], sizes = [16, 8], strides = [1, 1]} : vector<16x32xf32> to vector<16x8xf32>
    %55 = vector.extract_strided_slice %52 {offsets = [0, 16], sizes = [16, 8], strides = [1, 1]} : vector<16x32xf32> to vector<16x8xf32>
    %56 = vector.extract_strided_slice %52 {offsets = [0, 24], sizes = [16, 8], strides = [1, 1]} : vector<16x32xf32> to vector<16x8xf32>
    %57 = vector.shape_cast %53 : vector<16x8xf32> to vector<1x16x8xf32>
    %58 = vector.shape_cast %54 : vector<16x8xf32> to vector<1x16x8xf32>
    %59 = vector.shape_cast %55 : vector<16x8xf32> to vector<1x16x8xf32>
    %60 = vector.shape_cast %56 : vector<16x8xf32> to vector<1x16x8xf32>
    %61 = tpu.concatenate %57, %58, %59, %60 in 0 : vector<1x16x8xf32>, vector<1x16x8xf32>, vector<1x16x8xf32>, vector<1x16x8xf32> -> vector<4x16x8xf32>
    %62 = vector.extract_strided_slice %41 {offsets = [0, 64], sizes = [16, 32], strides = [1, 1]} : vector<16x96xf32> to vector<16x32xf32>
    %63 = vector.extract_strided_slice %62 {offsets = [0, 0], sizes = [16, 8], strides = [1, 1]} : vector<16x32xf32> to vector<16x8xf32>
    %64 = vector.extract_strided_slice %62 {offsets = [0, 8], sizes = [16, 8], strides = [1, 1]} : vector<16x32xf32> to vector<16x8xf32>
    %65 = vector.extract_strided_slice %62 {offsets = [0, 16], sizes = [16, 8], strides = [1, 1]} : vector<16x32xf32> to vector<16x8xf32>
    %66 = vector.extract_strided_slice %62 {offsets = [0, 24], sizes = [16, 8], strides = [1, 1]} : vector<16x32xf32> to vector<16x8xf32>
    %67 = vector.shape_cast %63 : vector<16x8xf32> to vector<1x16x8xf32>
    %68 = vector.shape_cast %64 : vector<16x8xf32> to vector<1x16x8xf32>
    %69 = vector.shape_cast %65 : vector<16x8xf32> to vector<1x16x8xf32>
    %70 = vector.shape_cast %66 : vector<16x8xf32> to vector<1x16x8xf32>
    %71 = tpu.concatenate %67, %68, %69, %70 in 0 : vector<1x16x8xf32>, vector<1x16x8xf32>, vector<1x16x8xf32>, vector<1x16x8xf32> -> vector<4x16x8xf32>
    %72 = arith.truncf %51 : vector<4x16x8xf32> to vector<4x16x8xbf16>
    %73 = arith.truncf %61 : vector<4x16x8xf32> to vector<4x16x8xbf16>
    "tpu.trace_start"() <{level = 10 : i32, message = "htd,hsd->hts"}> : () -> ()
    %cst_21 = arith.constant dense<0.000000e+00> : vector<4x16x16xf32>
    %74 = tpu.matmul %72, %73, %cst_21 {dimension_numbers = #tpu.dot_dimension_numbers<[2], [2], [1], [1], [0, 0, 0, 1, 1, 1], [0], [0]>} : vector<4x16x8xbf16>, vector<4x16x8xbf16>, vector<4x16x16xf32> -> vector<4x16x16xf32>
    "tpu.trace_stop"() : () -> ()
    %75 = vector.shape_cast %1 : vector<16x16xf32> to vector<1x16x16xf32>
    %76 = vector.broadcast %75 : vector<1x16x16xf32> to vector<4x16x16xf32>
    %77 = arith.addf %74, %76 : vector<4x16x16xf32>
    %cst_22 = arith.constant dense<0xFF800000> : vector<4x16xf32>
    %78 = vector.multi_reduction <maximumf>, %77, %cst_22 [2] : vector<4x16x16xf32> to vector<4x16xf32>
    %79 = vector.shape_cast %78 : vector<4x16xf32> to vector<4x16x1xf32>
    %80 = vector.broadcast %79 : vector<4x16x1xf32> to vector<4x16x16xf32>
    %81 = arith.subf %77, %80 : vector<4x16x16xf32>
    %82 = math.exp %81 : vector<4x16x16xf32>
    %cst_23 = arith.constant dense<0.000000e+00> : vector<4x16xf32>
    %83 = vector.multi_reduction <add>, %82, %cst_23 [2] : vector<4x16x16xf32> to vector<4x16xf32>
    %84 = vector.shape_cast %83 : vector<4x16xf32> to vector<4x16x1xf32>
    %85 = vector.broadcast %84 : vector<4x16x1xf32> to vector<4x16x16xf32>
    %86 = arith.divf %82, %85 : vector<4x16x16xf32>
    %87 = arith.truncf %86 : vector<4x16x16xf32> to vector<4x16x16xbf16>
    %88 = arith.truncf %71 : vector<4x16x8xf32> to vector<4x16x8xbf16>
    "tpu.trace_start"() <{level = 10 : i32, message = "hts,hsd->htd"}> : () -> ()
    %cst_24 = arith.constant dense<0.000000e+00> : vector<4x16x8xf32>
    %89 = tpu.matmul %87, %88, %cst_24 {dimension_numbers = #tpu.dot_dimension_numbers<[2], [1], [1], [2], [0, 0, 0, 1, 1, 2], [0], [0]>} : vector<4x16x16xbf16>, vector<4x16x8xbf16>, vector<4x16x8xf32> -> vector<4x16x8xf32>
    "tpu.trace_stop"() : () -> ()
    %90 = vector.extract_strided_slice %89 {offsets = [0, 0, 0], sizes = [1, 16, 8], strides = [1, 1, 1]} : vector<4x16x8xf32> to vector<1x16x8xf32>
    %91 = vector.shape_cast %90 : vector<1x16x8xf32> to vector<16x8xf32>
    %92 = vector.extract_strided_slice %89 {offsets = [1, 0, 0], sizes = [1, 16, 8], strides = [1, 1, 1]} : vector<4x16x8xf32> to vector<1x16x8xf32>
    %93 = vector.shape_cast %92 : vector<1x16x8xf32> to vector<16x8xf32>
    %94 = vector.extract_strided_slice %89 {offsets = [2, 0, 0], sizes = [1, 16, 8], strides = [1, 1, 1]} : vector<4x16x8xf32> to vector<1x16x8xf32>
    %95 = vector.shape_cast %94 : vector<1x16x8xf32> to vector<16x8xf32>
    %96 = vector.extract_strided_slice %89 {offsets = [3, 0, 0], sizes = [1, 16, 8], strides = [1, 1, 1]} : vector<4x16x8xf32> to vector<1x16x8xf32>
    %97 = vector.shape_cast %96 : vector<1x16x8xf32> to vector<16x8xf32>
    %98 = tpu.concatenate %91, %93, %95, %97 in 1 : vector<16x8xf32>, vector<16x8xf32>, vector<16x8xf32>, vector<16x8xf32> -> vector<16x32xf32>
    %c48_25 = arith.constant 48 : index
    %c0_26 = arith.constant 0 : index
    %99 = vector.load %arg2[%c48_25, %c0_26] : memref<496x128xbf16, #tpu.memory_space<vmem>>, vector<32x32xbf16>
    %100 = arith.truncf %98 : vector<16x32xf32> to vector<16x32xbf16>
    %cst_27 = arith.constant dense<0.000000e+00> : vector<16x32xf32>
    %101 = tpu.matmul %100, %99, %cst_27 {dimension_numbers = #tpu.dot_dimension_numbers<[1], [0], [0], [1], [0, 0, 1, 1], [], []>} : vector<16x32xbf16>, vector<32x32xbf16>, vector<16x32xf32> -> vector<16x32xf32>
    %102 = vector.broadcast %10 : vector<1x32xf32> to vector<16x32xf32>
    %103 = arith.addf %101, %102 : vector<16x32xf32>
    %104 = arith.addf %36, %103 : vector<16x32xf32>
    %cst_28 = arith.constant dense<0.000000e+00> : vector<16xf32>
    %105 = vector.multi_reduction <add>, %104, %cst_28 [1] : vector<16x32xf32> to vector<16xf32>
    %106 = vector.shape_cast %105 : vector<16xf32> to vector<16x1xf32>
    %107 = arith.mulf %104, %104 : vector<16x32xf32>
    %cst_29 = arith.constant dense<0.000000e+00> : vector<16xf32>
    %108 = vector.multi_reduction <add>, %107, %cst_29 [1] : vector<16x32xf32> to vector<16xf32>
    %109 = vector.shape_cast %108 : vector<16xf32> to vector<16x1xf32>
    %cst_30 = arith.constant 3.125000e-02 : f32
    %110 = vector.broadcast %cst_30 : f32 to vector<16x1xf32>
    %111 = arith.mulf %106, %110 : vector<16x1xf32>
    %cst_31 = arith.constant 3.125000e-02 : f32
    %112 = vector.broadcast %cst_31 : f32 to vector<16x1xf32>
    %113 = arith.mulf %109, %112 : vector<16x1xf32>
    %114 = arith.mulf %111, %111 : vector<16x1xf32>
    %115 = arith.subf %113, %114 : vector<16x1xf32>
    %116 = vector.broadcast %111 : vector<16x1xf32> to vector<16x32xf32>
    %117 = arith.subf %104, %116 : vector<16x32xf32>
    %cst_32 = arith.constant 9.99999974E-6 : f32
    %118 = vector.broadcast %cst_32 : f32 to vector<16x1xf32>
    %119 = arith.addf %115, %118 : vector<16x1xf32>
    %120 = math.rsqrt %119 : vector<16x1xf32>
    %121 = vector.broadcast %120 : vector<16x1xf32> to vector<16x32xf32>
    %122 = arith.mulf %117, %121 : vector<16x32xf32>
    %123 = vector.broadcast %11 : vector<1x32xf32> to vector<16x32xf32>
    %124 = arith.mulf %122, %123 : vector<16x32xf32>
    %125 = vector.broadcast %12 : vector<1x32xf32> to vector<16x32xf32>
    %126 = arith.addf %124, %125 : vector<16x32xf32>
    %c80 = arith.constant 80 : index
    %c0_33 = arith.constant 0 : index
    %127 = vector.load %arg2[%c80, %c0_33] : memref<496x128xbf16, #tpu.memory_space<vmem>>, vector<32x128xbf16>
    %128 = arith.truncf %126 : vector<16x32xf32> to vector<16x32xbf16>
    %cst_34 = arith.constant dense<0.000000e+00> : vector<16x128xf32>
    %129 = tpu.matmul %128, %127, %cst_34 {dimension_numbers = #tpu.dot_dimension_numbers<[1], [0], [0], [1], [0, 0, 1, 1], [], []>} : vector<16x32xbf16>, vector<32x128xbf16>, vector<16x128xf32> -> vector<16x128xf32>
    %130 = vector.broadcast %13 : vector<1x128xf32> to vector<16x128xf32>
    %131 = arith.addf %129, %130 : vector<16x128xf32>
    %cst_35 = arith.constant 5.000000e-01 : f32
    %132 = vector.broadcast %cst_35 : f32 to vector<16x128xf32>
    %133 = arith.mulf %132, %131 : vector<16x128xf32>
    %134 = arith.mulf %131, %131 : vector<16x128xf32>
    %135 = arith.mulf %131, %134 : vector<16x128xf32>
    %cst_36 = arith.constant 4.471500e-02 : f32
    %136 = vector.broadcast %cst_36 : f32 to vector<16x128xf32>
    %137 = arith.mulf %136, %135 : vector<16x128xf32>
    %138 = arith.addf %131, %137 : vector<16x128xf32>
    %cst_37 = arith.constant 0.797884583 : f32
    %139 = vector.broadcast %cst_37 : f32 to vector<16x128xf32>
    %140 = arith.mulf %139, %138 : vector<16x128xf32>
    %141 = math.tanh %140 : vector<16x128xf32>
    %cst_38 = arith.constant 1.000000e+00 : f32
    %142 = vector.broadcast %cst_38 : f32 to vector<16x128xf32>
    %143 = arith.addf %142, %141 : vector<16x128xf32>
    %144 = arith.mulf %133, %143 : vector<16x128xf32>
    %c112 = arith.constant 112 : index
    %c0_39 = arith.constant 0 : index
    %145 = vector.load %arg2[%c112, %c0_39] : memref<496x128xbf16, #tpu.memory_space<vmem>>, vector<128x32xbf16>
    %146 = arith.truncf %144 : vector<16x128xf32> to vector<16x128xbf16>
    %cst_40 = arith.constant dense<0.000000e+00> : vector<16x32xf32>
    %147 = tpu.matmul %146, %145, %cst_40 {dimension_numbers = #tpu.dot_dimension_numbers<[1], [0], [0], [1], [0, 0, 1, 1], [], []>} : vector<16x128xbf16>, vector<128x32xbf16>, vector<16x32xf32> -> vector<16x32xf32>
    %148 = vector.broadcast %14 : vector<1x32xf32> to vector<16x32xf32>
    %149 = arith.addf %147, %148 : vector<16x32xf32>
    %150 = arith.addf %104, %149 : vector<16x32xf32>
    %c56 = arith.constant 56 : index
    %c0_41 = arith.constant 0 : index
    %151 = vector.load %arg1[%c56, %c0_41] : memref<72x128xf32, #tpu.memory_space<vmem>>, vector<1x32xf32>
    %c57 = arith.constant 57 : index
    %c0_42 = arith.constant 0 : index
    %152 = vector.load %arg1[%c57, %c0_42] : memref<72x128xf32, #tpu.memory_space<vmem>>, vector<1x32xf32>
    %c58 = arith.constant 58 : index
    %c0_43 = arith.constant 0 : index
    %153 = vector.load %arg1[%c58, %c0_43] : memref<72x128xf32, #tpu.memory_space<vmem>>, vector<1x96xf32>
    %c59 = arith.constant 59 : index
    %c0_44 = arith.constant 0 : index
    %154 = vector.load %arg1[%c59, %c0_44] : memref<72x128xf32, #tpu.memory_space<vmem>>, vector<1x32xf32>
    %c60 = arith.constant 60 : index
    %c0_45 = arith.constant 0 : index
    %155 = vector.load %arg1[%c60, %c0_45] : memref<72x128xf32, #tpu.memory_space<vmem>>, vector<1x32xf32>
    %c61 = arith.constant 61 : index
    %c0_46 = arith.constant 0 : index
    %156 = vector.load %arg1[%c61, %c0_46] : memref<72x128xf32, #tpu.memory_space<vmem>>, vector<1x32xf32>
    %c62 = arith.constant 62 : index
    %c0_47 = arith.constant 0 : index
    %157 = vector.load %arg1[%c62, %c0_47] : memref<72x128xf32, #tpu.memory_space<vmem>>, vector<1x128xf32>
    %c63 = arith.constant 63 : index
    %c0_48 = arith.constant 0 : index
    %158 = vector.load %arg1[%c63, %c0_48] : memref<72x128xf32, #tpu.memory_space<vmem>>, vector<1x32xf32>
    %cst_49 = arith.constant dense<0.000000e+00> : vector<16xf32>
    %159 = vector.multi_reduction <add>, %150, %cst_49 [1] : vector<16x32xf32> to vector<16xf32>
    %160 = vector.shape_cast %159 : vector<16xf32> to vector<16x1xf32>
    %161 = arith.mulf %150, %150 : vector<16x32xf32>
    %cst_50 = arith.constant dense<0.000000e+00> : vector<16xf32>
    %162 = vector.multi_reduction <add>, %161, %cst_50 [1] : vector<16x32xf32> to vector<16xf32>
    %163 = vector.shape_cast %162 : vector<16xf32> to vector<16x1xf32>
    %cst_51 = arith.constant 3.125000e-02 : f32
    %164 = vector.broadcast %cst_51 : f32 to vector<16x1xf32>
    %165 = arith.mulf %160, %164 : vector<16x1xf32>
    %cst_52 = arith.constant 3.125000e-02 : f32
    %166 = vector.broadcast %cst_52 : f32 to vector<16x1xf32>
    %167 = arith.mulf %163, %166 : vector<16x1xf32>
    %168 = arith.mulf %165, %165 : vector<16x1xf32>
    %169 = arith.subf %167, %168 : vector<16x1xf32>
    %170 = vector.broadcast %165 : vector<16x1xf32> to vector<16x32xf32>
    %171 = arith.subf %150, %170 : vector<16x32xf32>
    %cst_53 = arith.constant 9.99999974E-6 : f32
    %172 = vector.broadcast %cst_53 : f32 to vector<16x1xf32>
    %173 = arith.addf %169, %172 : vector<16x1xf32>
    %174 = math.rsqrt %173 : vector<16x1xf32>
    %175 = vector.broadcast %174 : vector<16x1xf32> to vector<16x32xf32>
    %176 = arith.mulf %171, %175 : vector<16x32xf32>
    %177 = vector.broadcast %151 : vector<1x32xf32> to vector<16x32xf32>
    %178 = arith.mulf %176, %177 : vector<16x32xf32>
    %179 = vector.broadcast %152 : vector<1x32xf32> to vector<16x32xf32>
    %180 = arith.addf %178, %179 : vector<16x32xf32>
    %c240 = arith.constant 240 : index
    %c0_54 = arith.constant 0 : index
    %181 = vector.load %arg2[%c240, %c0_54] : memref<496x128xbf16, #tpu.memory_space<vmem>>, vector<32x96xbf16>
    %182 = arith.truncf %180 : vector<16x32xf32> to vector<16x32xbf16>
    %cst_55 = arith.constant dense<0.000000e+00> : vector<16x96xf32>
    %183 = tpu.matmul %182, %181, %cst_55 {dimension_numbers = #tpu.dot_dimension_numbers<[1], [0], [0], [1], [0, 0, 1, 1], [], []>} : vector<16x32xbf16>, vector<32x96xbf16>, vector<16x96xf32> -> vector<16x96xf32>
    %184 = vector.broadcast %153 : vector<1x96xf32> to vector<16x96xf32>
    %185 = arith.addf %183, %184 : vector<16x96xf32>
    %186 = vector.extract_strided_slice %185 {offsets = [0, 0], sizes = [16, 32], strides = [1, 1]} : vector<16x96xf32> to vector<16x32xf32>
    %187 = vector.extract_strided_slice %186 {offsets = [0, 0], sizes = [16, 8], strides = [1, 1]} : vector<16x32xf32> to vector<16x8xf32>
    %188 = vector.extract_strided_slice %186 {offsets = [0, 8], sizes = [16, 8], strides = [1, 1]} : vector<16x32xf32> to vector<16x8xf32>
    %189 = vector.extract_strided_slice %186 {offsets = [0, 16], sizes = [16, 8], strides = [1, 1]} : vector<16x32xf32> to vector<16x8xf32>
    %190 = vector.extract_strided_slice %186 {offsets = [0, 24], sizes = [16, 8], strides = [1, 1]} : vector<16x32xf32> to vector<16x8xf32>
    %191 = vector.shape_cast %187 : vector<16x8xf32> to vector<1x16x8xf32>
    %192 = vector.shape_cast %188 : vector<16x8xf32> to vector<1x16x8xf32>
    %193 = vector.shape_cast %189 : vector<16x8xf32> to vector<1x16x8xf32>
    %194 = vector.shape_cast %190 : vector<16x8xf32> to vector<1x16x8xf32>
    %195 = tpu.concatenate %191, %192, %193, %194 in 0 : vector<1x16x8xf32>, vector<1x16x8xf32>, vector<1x16x8xf32>, vector<1x16x8xf32> -> vector<4x16x8xf32>
    %196 = vector.extract_strided_slice %185 {offsets = [0, 32], sizes = [16, 32], strides = [1, 1]} : vector<16x96xf32> to vector<16x32xf32>
    %197 = vector.extract_strided_slice %196 {offsets = [0, 0], sizes = [16, 8], strides = [1, 1]} : vector<16x32xf32> to vector<16x8xf32>
    %198 = vector.extract_strided_slice %196 {offsets = [0, 8], sizes = [16, 8], strides = [1, 1]} : vector<16x32xf32> to vector<16x8xf32>
    %199 = vector.extract_strided_slice %196 {offsets = [0, 16], sizes = [16, 8], strides = [1, 1]} : vector<16x32xf32> to vector<16x8xf32>
    %200 = vector.extract_strided_slice %196 {offsets = [0, 24], sizes = [16, 8], strides = [1, 1]} : vector<16x32xf32> to vector<16x8xf32>
    %201 = vector.shape_cast %197 : vector<16x8xf32> to vector<1x16x8xf32>
    %202 = vector.shape_cast %198 : vector<16x8xf32> to vector<1x16x8xf32>
    %203 = vector.shape_cast %199 : vector<16x8xf32> to vector<1x16x8xf32>
    %204 = vector.shape_cast %200 : vector<16x8xf32> to vector<1x16x8xf32>
    %205 = tpu.concatenate %201, %202, %203, %204 in 0 : vector<1x16x8xf32>, vector<1x16x8xf32>, vector<1x16x8xf32>, vector<1x16x8xf32> -> vector<4x16x8xf32>
    %206 = vector.extract_strided_slice %185 {offsets = [0, 64], sizes = [16, 32], strides = [1, 1]} : vector<16x96xf32> to vector<16x32xf32>
    %207 = vector.extract_strided_slice %206 {offsets = [0, 0], sizes = [16, 8], strides = [1, 1]} : vector<16x32xf32> to vector<16x8xf32>
    %208 = vector.extract_strided_slice %206 {offsets = [0, 8], sizes = [16, 8], strides = [1, 1]} : vector<16x32xf32> to vector<16x8xf32>
    %209 = vector.extract_strided_slice %206 {offsets = [0, 16], sizes = [16, 8], strides = [1, 1]} : vector<16x32xf32> to vector<16x8xf32>
    %210 = vector.extract_strided_slice %206 {offsets = [0, 24], sizes = [16, 8], strides = [1, 1]} : vector<16x32xf32> to vector<16x8xf32>
    %211 = vector.shape_cast %207 : vector<16x8xf32> to vector<1x16x8xf32>
    %212 = vector.shape_cast %208 : vector<16x8xf32> to vector<1x16x8xf32>
    %213 = vector.shape_cast %209 : vector<16x8xf32> to vector<1x16x8xf32>
    %214 = vector.shape_cast %210 : vector<16x8xf32> to vector<1x16x8xf32>
    %215 = tpu.concatenate %211, %212, %213, %214 in 0 : vector<1x16x8xf32>, vector<1x16x8xf32>, vector<1x16x8xf32>, vector<1x16x8xf32> -> vector<4x16x8xf32>
    %216 = arith.truncf %195 : vector<4x16x8xf32> to vector<4x16x8xbf16>
    %217 = arith.truncf %205 : vector<4x16x8xf32> to vector<4x16x8xbf16>
    "tpu.trace_start"() <{level = 10 : i32, message = "htd,hsd->hts"}> : () -> ()
    %cst_56 = arith.constant dense<0.000000e+00> : vector<4x16x16xf32>
    %218 = tpu.matmul %216, %217, %cst_56 {dimension_numbers = #tpu.dot_dimension_numbers<[2], [2], [1], [1], [0, 0, 0, 1, 1, 1], [0], [0]>} : vector<4x16x8xbf16>, vector<4x16x8xbf16>, vector<4x16x16xf32> -> vector<4x16x16xf32>
    "tpu.trace_stop"() : () -> ()
    %219 = vector.shape_cast %1 : vector<16x16xf32> to vector<1x16x16xf32>
    %220 = vector.broadcast %219 : vector<1x16x16xf32> to vector<4x16x16xf32>
    %221 = arith.addf %218, %220 : vector<4x16x16xf32>
    %cst_57 = arith.constant dense<0xFF800000> : vector<4x16xf32>
    %222 = vector.multi_reduction <maximumf>, %221, %cst_57 [2] : vector<4x16x16xf32> to vector<4x16xf32>
    %223 = vector.shape_cast %222 : vector<4x16xf32> to vector<4x16x1xf32>
    %224 = vector.broadcast %223 : vector<4x16x1xf32> to vector<4x16x16xf32>
    %225 = arith.subf %221, %224 : vector<4x16x16xf32>
    %226 = math.exp %225 : vector<4x16x16xf32>
    %cst_58 = arith.constant dense<0.000000e+00> : vector<4x16xf32>
    %227 = vector.multi_reduction <add>, %226, %cst_58 [2] : vector<4x16x16xf32> to vector<4x16xf32>
    %228 = vector.shape_cast %227 : vector<4x16xf32> to vector<4x16x1xf32>
    %229 = vector.broadcast %228 : vector<4x16x1xf32> to vector<4x16x16xf32>
    %230 = arith.divf %226, %229 : vector<4x16x16xf32>
    %231 = arith.truncf %230 : vector<4x16x16xf32> to vector<4x16x16xbf16>
    %232 = arith.truncf %215 : vector<4x16x8xf32> to vector<4x16x8xbf16>
    "tpu.trace_start"() <{level = 10 : i32, message = "hts,hsd->htd"}> : () -> ()
    %cst_59 = arith.constant dense<0.000000e+00> : vector<4x16x8xf32>
    %233 = tpu.matmul %231, %232, %cst_59 {dimension_numbers = #tpu.dot_dimension_numbers<[2], [1], [1], [2], [0, 0, 0, 1, 1, 2], [0], [0]>} : vector<4x16x16xbf16>, vector<4x16x8xbf16>, vector<4x16x8xf32> -> vector<4x16x8xf32>
    "tpu.trace_stop"() : () -> ()
    %234 = vector.extract_strided_slice %233 {offsets = [0, 0, 0], sizes = [1, 16, 8], strides = [1, 1, 1]} : vector<4x16x8xf32> to vector<1x16x8xf32>
    %235 = vector.shape_cast %234 : vector<1x16x8xf32> to vector<16x8xf32>
    %236 = vector.extract_strided_slice %233 {offsets = [1, 0, 0], sizes = [1, 16, 8], strides = [1, 1, 1]} : vector<4x16x8xf32> to vector<1x16x8xf32>
    %237 = vector.shape_cast %236 : vector<1x16x8xf32> to vector<16x8xf32>
    %238 = vector.extract_strided_slice %233 {offsets = [2, 0, 0], sizes = [1, 16, 8], strides = [1, 1, 1]} : vector<4x16x8xf32> to vector<1x16x8xf32>
    %239 = vector.shape_cast %238 : vector<1x16x8xf32> to vector<16x8xf32>
    %240 = vector.extract_strided_slice %233 {offsets = [3, 0, 0], sizes = [1, 16, 8], strides = [1, 1, 1]} : vector<4x16x8xf32> to vector<1x16x8xf32>
    %241 = vector.shape_cast %240 : vector<1x16x8xf32> to vector<16x8xf32>
    %242 = tpu.concatenate %235, %237, %239, %241 in 1 : vector<16x8xf32>, vector<16x8xf32>, vector<16x8xf32>, vector<16x8xf32> -> vector<16x32xf32>
    %c272 = arith.constant 272 : index
    %c0_60 = arith.constant 0 : index
    %243 = vector.load %arg2[%c272, %c0_60] : memref<496x128xbf16, #tpu.memory_space<vmem>>, vector<32x32xbf16>
    %244 = arith.truncf %242 : vector<16x32xf32> to vector<16x32xbf16>
    %cst_61 = arith.constant dense<0.000000e+00> : vector<16x32xf32>
    %245 = tpu.matmul %244, %243, %cst_61 {dimension_numbers = #tpu.dot_dimension_numbers<[1], [0], [0], [1], [0, 0, 1, 1], [], []>} : vector<16x32xbf16>, vector<32x32xbf16>, vector<16x32xf32> -> vector<16x32xf32>
    %246 = vector.broadcast %154 : vector<1x32xf32> to vector<16x32xf32>
    %247 = arith.addf %245, %246 : vector<16x32xf32>
    %248 = arith.addf %180, %247 : vector<16x32xf32>
    %cst_62 = arith.constant dense<0.000000e+00> : vector<16xf32>
    %249 = vector.multi_reduction <add>, %248, %cst_62 [1] : vector<16x32xf32> to vector<16xf32>
    %250 = vector.shape_cast %249 : vector<16xf32> to vector<16x1xf32>
    %251 = arith.mulf %248, %248 : vector<16x32xf32>
    %cst_63 = arith.constant dense<0.000000e+00> : vector<16xf32>
    %252 = vector.multi_reduction <add>, %251, %cst_63 [1] : vector<16x32xf32> to vector<16xf32>
    %253 = vector.shape_cast %252 : vector<16xf32> to vector<16x1xf32>
    %cst_64 = arith.constant 3.125000e-02 : f32
    %254 = vector.broadcast %cst_64 : f32 to vector<16x1xf32>
    %255 = arith.mulf %250, %254 : vector<16x1xf32>
    %cst_65 = arith.constant 3.125000e-02 : f32
    %256 = vector.broadcast %cst_65 : f32 to vector<16x1xf32>
    %257 = arith.mulf %253, %256 : vector<16x1xf32>
    %258 = arith.mulf %255, %255 : vector<16x1xf32>
    %259 = arith.subf %257, %258 : vector<16x1xf32>
    %260 = vector.broadcast %255 : vector<16x1xf32> to vector<16x32xf32>
    %261 = arith.subf %248, %260 : vector<16x32xf32>
    %cst_66 = arith.constant 9.99999974E-6 : f32
    %262 = vector.broadcast %cst_66 : f32 to vector<16x1xf32>
    %263 = arith.addf %259, %262 : vector<16x1xf32>
    %264 = math.rsqrt %263 : vector<16x1xf32>
    %265 = vector.broadcast %264 : vector<16x1xf32> to vector<16x32xf32>
    %266 = arith.mulf %261, %265 : vector<16x32xf32>
    %267 = vector.broadcast %155 : vector<1x32xf32> to vector<16x32xf32>
    %268 = arith.mulf %266, %267 : vector<16x32xf32>
    %269 = vector.broadcast %156 : vector<1x32xf32> to vector<16x32xf32>
    %270 = arith.addf %268, %269 : vector<16x32xf32>
    %c304 = arith.constant 304 : index
    %c0_67 = arith.constant 0 : index
    %271 = vector.load %arg2[%c304, %c0_67] : memref<496x128xbf16, #tpu.memory_space<vmem>>, vector<32x128xbf16>
    %272 = arith.truncf %270 : vector<16x32xf32> to vector<16x32xbf16>
    %cst_68 = arith.constant dense<0.000000e+00> : vector<16x128xf32>
    %273 = tpu.matmul %272, %271, %cst_68 {dimension_numbers = #tpu.dot_dimension_numbers<[1], [0], [0], [1], [0, 0, 1, 1], [], []>} : vector<16x32xbf16>, vector<32x128xbf16>, vector<16x128xf32> -> vector<16x128xf32>
    %274 = vector.broadcast %157 : vector<1x128xf32> to vector<16x128xf32>
    %275 = arith.addf %273, %274 : vector<16x128xf32>
    %cst_69 = arith.constant 5.000000e-01 : f32
    %276 = vector.broadcast %cst_69 : f32 to vector<16x128xf32>
    %277 = arith.mulf %276, %275 : vector<16x128xf32>
    %278 = arith.mulf %275, %275 : vector<16x128xf32>
    %279 = arith.mulf %275, %278 : vector<16x128xf32>
    %cst_70 = arith.constant 4.471500e-02 : f32
    %280 = vector.broadcast %cst_70 : f32 to vector<16x128xf32>
    %281 = arith.mulf %280, %279 : vector<16x128xf32>
    %282 = arith.addf %275, %281 : vector<16x128xf32>
    %cst_71 = arith.constant 0.797884583 : f32
    %283 = vector.broadcast %cst_71 : f32 to vector<16x128xf32>
    %284 = arith.mulf %283, %282 : vector<16x128xf32>
    %285 = math.tanh %284 : vector<16x128xf32>
    %cst_72 = arith.constant 1.000000e+00 : f32
    %286 = vector.broadcast %cst_72 : f32 to vector<16x128xf32>
    %287 = arith.addf %286, %285 : vector<16x128xf32>
    %288 = arith.mulf %277, %287 : vector<16x128xf32>
    %c336 = arith.constant 336 : index
    %c0_73 = arith.constant 0 : index
    %289 = vector.load %arg2[%c336, %c0_73] : memref<496x128xbf16, #tpu.memory_space<vmem>>, vector<128x32xbf16>
    %290 = arith.truncf %288 : vector<16x128xf32> to vector<16x128xbf16>
    %cst_74 = arith.constant dense<0.000000e+00> : vector<16x32xf32>
    %291 = tpu.matmul %290, %289, %cst_74 {dimension_numbers = #tpu.dot_dimension_numbers<[1], [0], [0], [1], [0, 0, 1, 1], [], []>} : vector<16x128xbf16>, vector<128x32xbf16>, vector<16x32xf32> -> vector<16x32xf32>
    %292 = vector.broadcast %158 : vector<1x32xf32> to vector<16x32xf32>
    %293 = arith.addf %291, %292 : vector<16x32xf32>
    %294 = arith.addf %248, %293 : vector<16x32xf32>
    %c64 = arith.constant 64 : index
    %c0_75 = arith.constant 0 : index
    %295 = vector.load %arg1[%c64, %c0_75] : memref<72x128xf32, #tpu.memory_space<vmem>>, vector<1x32xf32>
    %c65 = arith.constant 65 : index
    %c0_76 = arith.constant 0 : index
    %296 = vector.load %arg1[%c65, %c0_76] : memref<72x128xf32, #tpu.memory_space<vmem>>, vector<1x32xf32>
    %cst_77 = arith.constant dense<0.000000e+00> : vector<16xf32>
    %297 = vector.multi_reduction <add>, %294, %cst_77 [1] : vector<16x32xf32> to vector<16xf32>
    %298 = vector.shape_cast %297 : vector<16xf32> to vector<16x1xf32>
    %299 = arith.mulf %294, %294 : vector<16x32xf32>
    %cst_78 = arith.constant dense<0.000000e+00> : vector<16xf32>
    %300 = vector.multi_reduction <add>, %299, %cst_78 [1] : vector<16x32xf32> to vector<16xf32>
    %301 = vector.shape_cast %300 : vector<16xf32> to vector<16x1xf32>
    %cst_79 = arith.constant 3.125000e-02 : f32
    %302 = vector.broadcast %cst_79 : f32 to vector<16x1xf32>
    %303 = arith.mulf %298, %302 : vector<16x1xf32>
    %cst_80 = arith.constant 3.125000e-02 : f32
    %304 = vector.broadcast %cst_80 : f32 to vector<16x1xf32>
    %305 = arith.mulf %301, %304 : vector<16x1xf32>
    %306 = arith.mulf %303, %303 : vector<16x1xf32>
    %307 = arith.subf %305, %306 : vector<16x1xf32>
    %308 = vector.broadcast %303 : vector<16x1xf32> to vector<16x32xf32>
    %309 = arith.subf %294, %308 : vector<16x32xf32>
    %cst_81 = arith.constant 9.99999974E-6 : f32
    %310 = vector.broadcast %cst_81 : f32 to vector<16x1xf32>
    %311 = arith.addf %307, %310 : vector<16x1xf32>
    %312 = math.rsqrt %311 : vector<16x1xf32>
    %313 = vector.broadcast %312 : vector<16x1xf32> to vector<16x32xf32>
    %314 = arith.mulf %309, %313 : vector<16x32xf32>
    %315 = vector.broadcast %295 : vector<1x32xf32> to vector<16x32xf32>
    %316 = arith.mulf %314, %315 : vector<16x32xf32>
    %317 = vector.broadcast %296 : vector<1x32xf32> to vector<16x32xf32>
    %318 = arith.addf %316, %317 : vector<16x32xf32>
    %c464 = arith.constant 464 : index
    %c0_82 = arith.constant 0 : index
    %319 = vector.load %arg2[%c464, %c0_82] : memref<496x128xbf16, #tpu.memory_space<vmem>>, vector<32x128xbf16>
    %320 = arith.truncf %318 : vector<16x32xf32> to vector<16x32xbf16>
    %cst_83 = arith.constant dense<0.000000e+00> : vector<16x128xf32>
    %321 = tpu.matmul %320, %319, %cst_83 {dimension_numbers = #tpu.dot_dimension_numbers<[1], [0], [0], [1], [0, 0, 1, 1], [], []>} : vector<16x32xbf16>, vector<32x128xbf16>, vector<16x128xf32> -> vector<16x128xf32>
    %c0_84 = arith.constant 0 : index
    %c0_85 = arith.constant 0 : index
    %322 = vector.load %arg3[%c0_84, %c0_85] : memref<16x128xf32, #tpu.memory_space<vmem>>, vector<16x128xf32>
    tpu.vector_store %arg3[%c0_84, %c0_85], %321 {strides = array<i32>} : memref<16x128xf32, #tpu.memory_space<vmem>>, vector<16x128xf32>,
    return
  }
  func.func @transform_0(%arg0: i32) -> (i32, i32) {
    %c0_i32 = arith.constant 0 : i32
    %c0_i32_0 = arith.constant 0 : i32
    %c0_i32_1 = arith.constant 0 : i32
    return %c0_i32, %c0_i32_0 : i32, i32
  }
  func.func @transform_1(%arg0: i32) -> (i32, i32) {
    %c0_i32 = arith.constant 0 : i32
    %c0_i32_0 = arith.constant 0 : i32
    %c0_i32_1 = arith.constant 0 : i32
    return %c0_i32, %c0_i32_0 : i32, i32
  }
  func.func @transform_2(%arg0: i32) -> (i32, i32) {
    %c0_i32 = arith.constant 0 : i32
    %c0_i32_0 = arith.constant 0 : i32
    %c0_i32_1 = arith.constant 0 : i32
    return %c0_i32, %c0_i32_0 : i32, i32
  }
}

</mosaic_0001>

<llo_original>
// kernel: tpu_custom_call.1
$region0: #{tpu_custom_call.1}
  #allocation0 [shape = 'u32[]', space=smem, size = 0x4, offset = 0x4, fixed_abs, tag = 'smem constant byte address 0x4 - core index']
  #allocation1 [shape = 'u32[144,128]{1,0:T(1,128)}', space=vmem, size = 0x12000, scoped, tag = 'internal scratch']
  %s0 = inlined_call_operand.hbm [shape: f32[72,128], index: 0, kind: input, shape index: {}]
  %s1 = inlined_call_operand.hbm [shape: bf16[496,128], index: 1, kind: input, shape index: {}]
  %s2 = inlined_call_operand.hbm [shape: f32[16,128], index: 2, kind: output, shape index: {}]
  %s3 = sld [smem:[#allocation0]]
  $region26: #{tpu_custom_call.1} parent=0
    _
  %s5 = ssub.s32 1, %s3
  %s6 = scalar_select 0, %s5, %s3
  $region1: #{tpu_custom_call.1} parent=0
    #allocation2 [shape = 'u8[36864]{0}', space=vmem, size = 0x9000, scoped, tag = 'input window, operand 0, single buffered']
    #allocation3 [shape = 's32[1]{0}', space=sflag, size = 0x4, scoped, tag = 'scoped memory for tpu_custom_call.1']
    #allocation4 [shape = 's32[1]{0}', space=sflag, size = 0x4, scoped, tag = 'scoped memory for tpu_custom_call.1']
    #allocation5 [shape = 'u8[126976]{0}', space=vmem, size = 0x1f000, scoped, tag = 'input window, operand 1, single buffered']
    #allocation6 [shape = 's32[1]{0}', space=sflag, size = 0x4, scoped, tag = 'scoped memory for tpu_custom_call.1']
    #allocation7 [shape = 'u8[8192]{0}', space=vmem, size = 0x2000, scoped, tag = 'output window, operand 0, single buffered']
    %7 = vsyncpa [#allocation3], 0
    %8 = vsyncpa [#allocation6], 0
    %9 = vsyncpa [#allocation4], 0
    // Predicated region
    $region2: #{tpu_custom_call.1} parent=1 // pred_check
      _
    $region3: #{tpu_custom_call.1} parent=1 // pred_check_branch
      %11 = sbr.rel (0) target = $region5
    $region4: #{tpu_custom_call.1} parent=1 // pred_region
      %s13 = ssub.s32 1152, 1152
      %14 = vsyncadd [#allocation3], %s13
      %s15 = sshll.u32 [#allocation2], 4
      %s16 = int_to_ptr.vmem [resolvable:$true] %s15
      %21 = dma.hbm_to_vmem [thread:$0]  %s0, 1152, %s16, [#allocation3], 128, 128, 8
    $region5: #{tpu_custom_call.1} parent=1 // pred_fallthru
      _
    // Predicated region
    $region6: #{tpu_custom_call.1} parent=1 // pred_check
      _
    $region7: #{tpu_custom_call.1} parent=1 // pred_check_branch
      %23 = sbr.rel (0) target = $region9
    $region8: #{tpu_custom_call.1} parent=1 // pred_region
      %s25 = ssub.s32 3968, 3968
      %26 = vsyncadd [#allocation6], %s25
      %s27 = sshll.u32 [#allocation5], 4
      %s28 = int_to_ptr.vmem [resolvable:$true] %s27
      %33 = dma.hbm_to_vmem [thread:$0]  %s1, 3968, %s28, [#allocation6], 64, 64, 4
    $region9: #{tpu_custom_call.1} parent=1 // pred_fallthru
      _
    // Predicated region
    $region10: #{tpu_custom_call.1} parent=1 // pred_check
      _
    $region11: #{tpu_custom_call.1} parent=1 // pred_check_branch
      %35 = sbr.rel (0) target = $region13
    $region12: #{tpu_custom_call.1} parent=1 // pred_region
      %36 = dma.done [#allocation3], 1152
    $region13: #{tpu_custom_call.1} parent=1 // pred_fallthru
      _
    // Predicated region
    $region14: #{tpu_custom_call.1} parent=1 // pred_check
      _
    $region15: #{tpu_custom_call.1} parent=1 // pred_check_branch
      %38 = sbr.rel (0) target = $region17
    $region16: #{tpu_custom_call.1} parent=1 // pred_region
      %39 = dma.done [#allocation6], 3968
    $region17: #{tpu_custom_call.1} parent=1 // pred_fallthru
      _
    %v41 = vld [vmem:[#allocation2] sm:$0xff]
    %v42 = vld [vmem:[#allocation2 + $0x8] sm:$0xff]
    %v43 = vld [vmem:[#allocation2 + $0x10] sm:$0xff]
    %v44 = vld [vmem:[#allocation2 + $0x18] sm:$0xff]
    %v45 = vld [vmem:[#allocation2 + $0x20] sm:$0xff]
    %v46 = vld [vmem:[#allocation2 + $0x28] sm:$0xff]
    %v47 = vld [vmem:[#allocation5] sm:$0xf]
    %v48 = vld [vmem:[#allocation5 + $0x4] sm:$0xf]
    %v49 = vpack.c.bf16 %v42, %v41
    %v52 = vunpack.c.l.b16 %v47
    %v53 = vunpack.c.l.b16 %v48
    %v54 = vpack.c.b16 %v53, %v52
    %vm56 = vcmask 130048
    %v58 = vsel %vm56, %v49, 0
    %60 = vmatprep.subr.bf16.mxu0 0
    %61 = vmatpush1.bf16.msra.mxu0 0
    %62 = vmatprep.subr.bf16.mxu0 0
    %63 = vmatpush1.bf16.msra.mxu0 0
    %64 = vmatprep.subr.bf16.mxu0 0
    %65 = vmatpush1.bf16.msra.mxu0 0
    %66 = vmatprep.subr.bf16.mxu0 0
    %67 = vmatpush1.bf16.msra.mxu0 0
    %68 = vmatprep.subr.bf16.mxu0 0
    %69 = vmatpush1.bf16.msra.mxu0 0
    %70 = vmatprep.subr.bf16.mxu0 0
    %71 = vmatpush1.bf16.msra.mxu0 0
    %72 = vmatprep.subr.bf16.mxu0 0
    %73 = vmatpush1.bf16.msra.mxu0 0
    %74 = vmatprep.subr.bf16.mxu0 0
    %75 = vmatpush1.bf16.msra.mxu0 %v54
    %76 = vmatprep.subr.bf16.mxu0 0
    %77 = vmatpush2.bf16.msra.mxu0 0
    %78 = vmatprep.subr.bf16.mxu0 0
    %79 = vmatpush2.bf16.msra.mxu0 0
    %80 = vmatprep.subr.bf16.mxu0 0
    %81 = vmatpush2.bf16.msra.mxu0 0
    %82 = vmatprep.subr.bf16.mxu0 0
    %83 = vmatpush2.bf16.msra.mxu0 0
    %84 = vmatprep.subr.bf16.mxu0 0
    %85 = vmatpush2.bf16.msra.mxu0 0
    %86 = vmatprep.subr.bf16.mxu0 0
    %87 = vmatpush2.bf16.msra.mxu0 0
    %88 = vmatprep.subr.bf16.mxu0 0
    %89 = vmatpush2.bf16.msra.mxu0 0
    %90 = vmatprep.subr.bf16.mxu0 0
    %91 = vmatpush2.bf16.msra.mxu0 0
    %92 = vmatprep.mubr.bf16.mxu0 0
    %93 = vmatmul.mubr.bf16.gmra.mxu0 %v58
    %v94 = vpop.f32.mrf.mxu0
    %v95 = vadd.f32 %v45, %v94
    %v96 = vpop.f32.mrf.mxu0
    %v97 = vpop.f32.mrf.mxu0
    %v98 = vadd.f32 %v46, %v97
    %v99 = vpop.f32.mrf.mxu0
    %100 = vdwg.mxu0
    %v101 = vld [vmem:[#allocation2 + $0x30] sm:$0x1]
    %v102 = vld [vmem:[#allocation2 + $0x31] sm:$0x1]
    %v103 = vld [vmem:[#allocation2 + $0x32] sm:$0x1]
    %v104 = vld [vmem:[#allocation2 + $0x33] sm:$0x1]
    %v105 = vld [vmem:[#allocation2 + $0x34] sm:$0x1]
    %v106 = vld [vmem:[#allocation2 + $0x35] sm:$0x1]
    %v107 = vld [vmem:[#allocation2 + $0x36] sm:$0x1]
    %v108 = vld [vmem:[#allocation2 + $0x37] sm:$0x1]
    %vm109 = vcmask 261120
    %v110 = vsel %vm109, %v95, 0.0
    %111 = vadd.xlane.f32.xlu0 %v110
    %v112 = vpop.xlane.xlu0 %111
    %v113 = vsel %vm109, %v98, 0.0
    %114 = vadd.xlane.f32.xlu0 %v113
    %v115 = vpop.xlane.xlu0 %114
    %v116 = vmul.f32 %v95, %v95
    %v117 = vmul.f32 %v98, %v98
    %v118 = vsel %vm109, %v116, 0.0
    %119 = vadd.xlane.f32.xlu0 %v118
    %v120 = vpop.xlane.xlu0 %119
    %v121 = vsel %vm109, %v117, 0.0
    %122 = vadd.xlane.f32.xlu0 %v121
    %v123 = vpop.xlane.xlu0 %122
    %v124 = vmul.f32 %v112, 0.03125
    %v125 = vmul.f32 %v115, 0.03125
    %v126 = vmul.f32 %v120, 0.03125
    %v127 = vmul.f32 %v123, 0.03125
    %v128 = vmul.f32 %v124, %v124
    %v129 = vmul.f32 %v125, %v125
    %v130 = vsub.f32 %v126, %v128
    %v131 = vsub.f32 %v127, %v129
    %v132 = vsub.f32 %v95, %v124
    %v133 = vsub.f32 %v98, %v125
    %v134 = vadd.f32 %v130, 1e-05
    %v135 = vadd.f32 %v131, 1e-05
    %v136 = vrsqrt.pop %v134
    %v137 = vrsqrt.pop %v135
    %v138 = vmul.f32 %v132, %v136
    %v139 = vmul.f32 %v133, %v137
    %v140 = vlaneseq
    %v141 = vshrl.u32 %v140, 7
    %v142 = vsub.s32 0, %v141
    %v143 = vrot.slane %v101, %v142
    %v144 = vmul.f32 %v138, %v143
    %v145 = vmul.f32 %v139, %v143
    %v146 = vlaneseq
    %v147 = vshrl.u32 %v146, 7
    %v148 = vsub.s32 0, %v147
    %v149 = vrot.slane %v102, %v148
    %v150 = vadd.f32 %v144, %v149
    %v151 = vadd.f32 %v145, %v149
    %v152 = vld [vmem:[#allocation5 + $0x8] sm:$0xf]
    %v153 = vld [vmem:[#allocation5 + $0xc] sm:$0xf]
    %v154 = vld [vmem:[#allocation5 + $0x10] sm:$0xf]
    %v155 = vld [vmem:[#allocation5 + $0x14] sm:$0xf]
    %v156 = vpack.c.bf16 %v151, %v150
    %v157 = vlaneseq
    %v158 = vshrl.u32 %v157, 7
    %v159 = vsub.s32 0, %v158
    %v160 = vrot.slane %v103, %v159
    %v165 = vunpack.c.l.b16 %v152
    %v166 = vunpack.c.l.b16 %v153
    %v167 = vunpack.c.l.b16 %v154
    %v168 = vunpack.c.l.b16 %v155
    %v169 = vpack.c.b16 %v166, %v165
    %v170 = vpack.c.b16 %v168, %v167
    %v174 = vsel %vm109, %v156, 0
    %176 = vmatprep.subr.bf16.mxu0 0
    %177 = vmatpush1.bf16.msra.mxu0 0
    %178 = vmatprep.subr.bf16.mxu0 0
    %179 = vmatpush1.bf16.msra.mxu0 0
    %180 = vmatprep.subr.bf16.mxu0 0
    %181 = vmatpush1.bf16.msra.mxu0 0
    %182 = vmatprep.subr.bf16.mxu0 0
    %183 = vmatpush1.bf16.msra.mxu0 0
    %184 = vmatprep.subr.bf16.mxu0 0
    %185 = vmatpush1.bf16.msra.mxu0 0
    %186 = vmatprep.subr.bf16.mxu0 0
    %187 = vmatpush1.bf16.msra.mxu0 0
    %188 = vmatprep.subr.bf16.mxu0 0
    %189 = vmatpush1.bf16.msra.mxu0 %v170
    %190 = vmatprep.subr.bf16.mxu0 0
    %191 = vmatpush1.bf16.msra.mxu0 %v169
    %192 = vmatprep.subr.bf16.mxu0 0
    %193 = vmatpush2.bf16.msra.mxu0 0
    %194 = vmatprep.subr.bf16.mxu0 0
    %195 = vmatpush2.bf16.msra.mxu0 0
    %196 = vmatprep.subr.bf16.mxu0 0
    %197 = vmatpush2.bf16.msra.mxu0 0
    %198 = vmatprep.subr.bf16.mxu0 0
    %199 = vmatpush2.bf16.msra.mxu0 0
    %200 = vmatprep.subr.bf16.mxu0 0
    %201 = vmatpush2.bf16.msra.mxu0 0
    %202 = vmatprep.subr.bf16.mxu0 0
    %203 = vmatpush2.bf16.msra.mxu0 0
    %204 = vmatprep.subr.bf16.mxu0 0
    %205 = vmatpush2.bf16.msra.mxu0 0
    %206 = vmatprep.subr.bf16.mxu0 0
    %207 = vmatpush2.bf16.msra.mxu0 0
    %208 = vmatprep.mubr.bf16.mxu0 0
    %209 = vmatmul.mubr.bf16.gmra.mxu0 %v174
    %v210 = vpop.f32.mrf.mxu0
    %v211 = vadd.f32 %v160, %v210
    %v212 = vpop.f32.mrf.mxu0
    %v213 = vpop.f32.mrf.mxu0
    %v214 = vadd.f32 %v160, %v213
    %v215 = vpop.f32.mrf.mxu0
    %216 = vdwg.mxu0
    %219 = vrot.lane.b32.xlu0 %v211, 120
    %v220 = vpop.permute.xlu0 %219
    %221 = vrot.lane.b32.xlu0 %v214, 120
    %v222 = vpop.permute.xlu0 %221
    %225 = vrot.lane.b32.xlu0 %v211, 112
    %v226 = vpop.permute.xlu0 %225
    %227 = vrot.lane.b32.xlu0 %v214, 112
    %v228 = vpop.permute.xlu0 %227
    %231 = vrot.lane.b32.xlu0 %v211, 104
    %v232 = vpop.permute.xlu0 %231
    %233 = vrot.lane.b32.xlu0 %v214, 104
    %v234 = vpop.permute.xlu0 %233
    %v237 = vpack.c.bf16 %v214, %v211
    %v238 = vpack.c.bf16 %v222, %v220
    %v239 = vpack.c.bf16 %v228, %v226
    %v240 = vpack.c.bf16 %v234, %v232
    %242 = vrot.lane.b32.xlu0 %v237, 96
    %v243 = vpop.permute.xlu0 %242
    %vm244 = vcmask 64512
    %v246 = vsel %vm244, %v237, 0
    %v249 = vsel %vm244, %v243, 0
    %251 = vmatprep.subr.bf16.mxu0 0
    %252 = vmatpush1.bf16.xpose.msra.mxu0 0
    %253 = vmatprep.subr.bf16.mxu0 0
    %254 = vmatpush1.bf16.xpose.msra.mxu0 0
    %255 = vmatprep.subr.bf16.mxu0 0
    %256 = vmatpush1.bf16.xpose.msra.mxu0 0
    %257 = vmatprep.subr.bf16.mxu0 0
    %258 = vmatpush1.bf16.xpose.msra.mxu0 0
    %259 = vmatprep.subr.bf16.mxu0 0
    %260 = vmatpush1.bf16.xpose.msra.mxu0 0
    %261 = vmatprep.subr.bf16.mxu0 0
    %262 = vmatpush1.bf16.xpose.msra.mxu0 0
    %263 = vmatprep.subr.bf16.mxu0 0
    %264 = vmatpush1.bf16.xpose.msra.mxu0 0
    %265 = vmatprep.subr.bf16.mxu0 0
    %266 = vmatpush1.bf16.xpose.msra.mxu0 %v249
    %267 = vmatprep.subr.bf16.mxu0 0
    %268 = vmatpush2.bf16.xpose.msra.mxu0 0
    %269 = vmatprep.subr.bf16.mxu0 0
    %270 = vmatpush2.bf16.xpose.msra.mxu0 0
    %271 = vmatprep.subr.bf16.mxu0 0
    %272 = vmatpush2.bf16.xpose.msra.mxu0 0
    %273 = vmatprep.subr.bf16.mxu0 0
    %274 = vmatpush2.bf16.xpose.msra.mxu0 0
    %275 = vmatprep.subr.bf16.mxu0 0
    %276 = vmatpush2.bf16.xpose.msra.mxu0 0
    %277 = vmatprep.subr.bf16.mxu0 0
    %278 = vmatpush2.bf16.xpose.msra.mxu0 0
    %279 = vmatprep.subr.bf16.mxu0 0
    %280 = vmatpush2.bf16.xpose.msra.mxu0 0
    %281 = vmatprep.subr.bf16.mxu0 0
    %282 = vmatpush2.bf16.xpose.msra.mxu0 0
    %283 = vmatprep.mubr.bf16.mxu0 0
    %284 = vmatmul.mubr.bf16.gmra.mxu0 %v246
    %v285 = vpop.f32.mrf.mxu0
    %v286 = vadd.f32 %v43, %v285
    %v287 = vpop.f32.mrf.mxu0
    %v288 = vpop.f32.mrf.mxu0
    %v289 = vadd.f32 %v44, %v288
    %v290 = vpop.f32.mrf.mxu0
    %291 = vdwg.mxu0
    %293 = vrot.lane.b32.xlu0 %v238, 96
    %v294 = vpop.permute.xlu0 %293
    %v296 = vsel %vm244, %v238, 0
    %v299 = vsel %vm244, %v294, 0
    %301 = vmatprep.subr.bf16.mxu0 0
    %302 = vmatpush1.bf16.xpose.msra.mxu0 0
    %303 = vmatprep.subr.bf16.mxu0 0
    %304 = vmatpush1.bf16.xpose.msra.mxu0 0
    %305 = vmatprep.subr.bf16.mxu0 0
    %306 = vmatpush1.bf16.xpose.msra.mxu0 0
    %307 = vmatprep.subr.bf16.mxu0 0
    %308 = vmatpush1.bf16.xpose.msra.mxu0 0
    %309 = vmatprep.subr.bf16.mxu0 0
    %310 = vmatpush1.bf16.xpose.msra.mxu0 0
    %311 = vmatprep.subr.bf16.mxu0 0
    %312 = vmatpush1.bf16.xpose.msra.mxu0 0
    %313 = vmatprep.subr.bf16.mxu0 0
    %314 = vmatpush1.bf16.xpose.msra.mxu0 0
    %315 = vmatprep.subr.bf16.mxu0 0
    %316 = vmatpush1.bf16.xpose.msra.mxu0 %v299
    %317 = vmatprep.subr.bf16.mxu0 0
    %318 = vmatpush2.bf16.xpose.msra.mxu0 0
    %319 = vmatprep.subr.bf16.mxu0 0
    %320 = vmatpush2.bf16.xpose.msra.mxu0 0
    %321 = vmatprep.subr.bf16.mxu0 0
    %322 = vmatpush2.bf16.xpose.msra.mxu0 0
    %323 = vmatprep.subr.bf16.mxu0 0
    %324 = vmatpush2.bf16.xpose.msra.mxu0 0
    %325 = vmatprep.subr.bf16.mxu0 0
    %326 = vmatpush2.bf16.xpose.msra.mxu0 0
    %327 = vmatprep.subr.bf16.mxu0 0
    %328 = vmatpush2.bf16.xpose.msra.mxu0 0
    %329 = vmatprep.subr.bf16.mxu0 0
    %330 = vmatpush2.bf16.xpose.msra.mxu0 0
    %331 = vmatprep.subr.bf16.mxu0 0
    %332 = vmatpush2.bf16.xpose.msra.mxu0 0
    %333 = vmatprep.mubr.bf16.mxu0 0
    %334 = vmatmul.mubr.bf16.gmra.mxu0 %v296
    %v335 = vpop.f32.mrf.mxu0
    %v336 = vadd.f32 %v43, %v335
    %v337 = vpop.f32.mrf.mxu0
    %v338 = vpop.f32.mrf.mxu0
    %v339 = vadd.f32 %v44, %v338
    %v340 = vpop.f32.mrf.mxu0
    %341 = vdwg.mxu0
    %343 = vrot.lane.b32.xlu0 %v239, 96
    %v344 = vpop.permute.xlu0 %343
    %v346 = vsel %vm244, %v239, 0
    %v349 = vsel %vm244, %v344, 0
    %351 = vmatprep.subr.bf16.mxu0 0
    %352 = vmatpush1.bf16.xpose.msra.mxu0 0
    %353 = vmatprep.subr.bf16.mxu0 0
    %354 = vmatpush1.bf16.xpose.msra.mxu0 0
    %355 = vmatprep.subr.bf16.mxu0 0
    %356 = vmatpush1.bf16.xpose.msra.mxu0 0
    %357 = vmatprep.subr.bf16.mxu0 0
    %358 = vmatpush1.bf16.xpose.msra.mxu0 0
    %359 = vmatprep.subr.bf16.mxu0 0
    %360 = vmatpush1.bf16.xpose.msra.mxu0 0
    %361 = vmatprep.subr.bf16.mxu0 0
    %362 = vmatpush1.bf16.xpose.msra.mxu0 0
    %363 = vmatprep.subr.bf16.mxu0 0
    %364 = vmatpush1.bf16.xpose.msra.mxu0 0
    %365 = vmatprep.subr.bf16.mxu0 0
    %366 = vmatpush1.bf16.xpose.msra.mxu0 %v349
    %367 = vmatprep.subr.bf16.mxu0 0
    %368 = vmatpush2.bf16.xpose.msra.mxu0 0
    %369 = vmatprep.subr.bf16.mxu0 0
    %370 = vmatpush2.bf16.xpose.msra.mxu0 0
    %371 = vmatprep.subr.bf16.mxu0 0
    %372 = vmatpush2.bf16.xpose.msra.mxu0 0
    %373 = vmatprep.subr.bf16.mxu0 0
    %374 = vmatpush2.bf16.xpose.msra.mxu0 0
    %375 = vmatprep.subr.bf16.mxu0 0
    %376 = vmatpush2.bf16.xpose.msra.mxu0 0
    %377 = vmatprep.subr.bf16.mxu0 0
    %378 = vmatpush2.bf16.xpose.msra.mxu0 0
    %379 = vmatprep.subr.bf16.mxu0 0
    %380 = vmatpush2.bf16.xpose.msra.mxu0 0
    %381 = vmatprep.subr.bf16.mxu0 0
    %382 = vmatpush2.bf16.xpose.msra.mxu0 0
    %383 = vmatprep.mubr.bf16.mxu0 0
    %384 = vmatmul.mubr.bf16.gmra.mxu0 %v346
    %v385 = vpop.f32.mrf.mxu0
    %v386 = vadd.f32 %v43, %v385
    %v387 = vpop.f32.mrf.mxu0
    %v388 = vpop.f32.mrf.mxu0
    %v389 = vadd.f32 %v44, %v388
    %v390 = vpop.f32.mrf.mxu0
    %391 = vdwg.mxu0
    %393 = vrot.lane.b32.xlu0 %v240, 96
    %v394 = vpop.permute.xlu0 %393
    %v396 = vsel %vm244, %v240, 0
    %v399 = vsel %vm244, %v394, 0
    %401 = vmatprep.subr.bf16.mxu0 0
    %402 = vmatpush1.bf16.xpose.msra.mxu0 0
    %403 = vmatprep.subr.bf16.mxu0 0
    %404 = vmatpush1.bf16.xpose.msra.mxu0 0
    %405 = vmatprep.subr.bf16.mxu0 0
    %406 = vmatpush1.bf16.xpose.msra.mxu0 0
    %407 = vmatprep.subr.bf16.mxu0 0
    %408 = vmatpush1.bf16.xpose.msra.mxu0 0
    %409 = vmatprep.subr.bf16.mxu0 0
    %410 = vmatpush1.bf16.xpose.msra.mxu0 0
    %411 = vmatprep.subr.bf16.mxu0 0
    %412 = vmatpush1.bf16.xpose.msra.mxu0 0
    %413 = vmatprep.subr.bf16.mxu0 0
    %414 = vmatpush1.bf16.xpose.msra.mxu0 0
    %415 = vmatprep.subr.bf16.mxu0 0
    %416 = vmatpush1.bf16.xpose.msra.mxu0 %v399
    %417 = vmatprep.subr.bf16.mxu0 0
    %418 = vmatpush2.bf16.xpose.msra.mxu0 0
    %419 = vmatprep.subr.bf16.mxu0 0
    %420 = vmatpush2.bf16.xpose.msra.mxu0 0
    %421 = vmatprep.subr.bf16.mxu0 0
    %422 = vmatpush2.bf16.xpose.msra.mxu0 0
    %423 = vmatprep.subr.bf16.mxu0 0
    %424 = vmatpush2.bf16.xpose.msra.mxu0 0
    %425 = vmatprep.subr.bf16.mxu0 0
    %426 = vmatpush2.bf16.xpose.msra.mxu0 0
    %427 = vmatprep.subr.bf16.mxu0 0
    %428 = vmatpush2.bf16.xpose.msra.mxu0 0
    %429 = vmatprep.subr.bf16.mxu0 0
    %430 = vmatpush2.bf16.xpose.msra.mxu0 0
    %431 = vmatprep.subr.bf16.mxu0 0
    %432 = vmatpush2.bf16.xpose.msra.mxu0 0
    %433 = vmatprep.mubr.bf16.mxu0 0
    %434 = vmatmul.mubr.bf16.gmra.mxu0 %v396
    %v435 = vpop.f32.mrf.mxu0
    %v436 = vadd.f32 %v43, %v435
    %v437 = vpop.f32.mrf.mxu0
    %v438 = vpop.f32.mrf.mxu0
    %v439 = vadd.f32 %v44, %v438
    %v440 = vpop.f32.mrf.mxu0
    %441 = vdwg.mxu0
    %v442 = vsel %vm56, %v286, -inf
    %443 = vmax.xlane.f32.xlu0 %v442
    %v444 = vpop.xlane.xlu0 %443
    %v445 = vsel %vm56, %v289, -inf
    %446 = vmax.xlane.f32.xlu0 %v445
    %v447 = vpop.xlane.xlu0 %446
    %v448 = vsel %vm56, %v336, -inf
    %449 = vmax.xlane.f32.xlu0 %v448
    %v450 = vpop.xlane.xlu0 %449
    %v451 = vsel %vm56, %v339, -inf
    %452 = vmax.xlane.f32.xlu0 %v451
    %v453 = vpop.xlane.xlu0 %452
    %v454 = vsel %vm56, %v386, -inf
    %455 = vmax.xlane.f32.xlu0 %v454
    %v456 = vpop.xlane.xlu0 %455
    %v457 = vsel %vm56, %v389, -inf
    %458 = vmax.xlane.f32.xlu0 %v457
    %v459 = vpop.xlane.xlu0 %458
    %v460 = vsel %vm56, %v436, -inf
    %461 = vmax.xlane.f32.xlu0 %v460
    %v462 = vpop.xlane.xlu0 %461
    %v463 = vsel %vm56, %v439, -inf
    %464 = vmax.xlane.f32.xlu0 %v463
    %v465 = vpop.xlane.xlu0 %464
    %v466 = vsub.f32 %v286, %v444
    %v467 = vsub.f32 %v289, %v447
    %v468 = vsub.f32 %v336, %v450
    %v469 = vsub.f32 %v339, %v453
    %v470 = vsub.f32 %v386, %v456
    %v471 = vsub.f32 %v389, %v459
    %v472 = vsub.f32 %v436, %v462
    %v473 = vsub.f32 %v439, %v465
    %v474 = vmul.f32 %v466, 1.442695
    %v475 = vpow.pop %v474
    %v476 = vmul.f32 %v467, 1.442695
    %v477 = vpow.pop %v476
    %v478 = vmul.f32 %v468, 1.442695
    %v479 = vpow.pop %v478
    %v480 = vmul.f32 %v469, 1.442695
    %v481 = vpow.pop %v480
    %v482 = vmul.f32 %v470, 1.442695
    %v483 = vpow.pop %v482
    %v484 = vmul.f32 %v471, 1.442695
    %v485 = vpow.pop %v484
    %v486 = vmul.f32 %v472, 1.442695
    %v487 = vpow.pop %v486
    %v488 = vmul.f32 %v473, 1.442695
    %v489 = vpow.pop %v488
    %v490 = vsel %vm56, %v475, 0.0
    %491 = vadd.xlane.f32.xlu0 %v490
    %v492 = vpop.xlane.xlu0 %491
    %v493 = vsel %vm56, %v477, 0.0
    %494 = vadd.xlane.f32.xlu0 %v493
    %v495 = vpop.xlane.xlu0 %494
    %v496 = vsel %vm56, %v479, 0.0
    %497 = vadd.xlane.f32.xlu0 %v496
    %v498 = vpop.xlane.xlu0 %497
    %v499 = vsel %vm56, %v481, 0.0
    %500 = vadd.xlane.f32.xlu0 %v499
    %v501 = vpop.xlane.xlu0 %500
    %v502 = vsel %vm56, %v483, 0.0
    %503 = vadd.xlane.f32.xlu0 %v502
    %v504 = vpop.xlane.xlu0 %503
    %v505 = vsel %vm56, %v485, 0.0
    %506 = vadd.xlane.f32.xlu0 %v505
    %v507 = vpop.xlane.xlu0 %506
    %v508 = vsel %vm56, %v487, 0.0
    %509 = vadd.xlane.f32.xlu0 %v508
    %v510 = vpop.xlane.xlu0 %509
    %v511 = vsel %vm56, %v489, 0.0
    %512 = vadd.xlane.f32.xlu0 %v511
    %v513 = vpop.xlane.xlu0 %512
    %v514 = vrcp.pop %v492
    %v515 = vmul.f32 %v475, %v514
    %v516 = vrcp.pop %v495
    %v517 = vmul.f32 %v477, %v516
    %v518 = vrcp.pop %v498
    %v519 = vmul.f32 %v479, %v518
    %v520 = vrcp.pop %v501
    %v521 = vmul.f32 %v481, %v520
    %v522 = vrcp.pop %v504
    %v523 = vmul.f32 %v483, %v522
    %v524 = vrcp.pop %v507
    %v525 = vmul.f32 %v485, %v524
    %v526 = vrcp.pop %v510
    %v527 = vmul.f32 %v487, %v526
    %v528 = vrcp.pop %v513
    %v529 = vmul.f32 %v489, %v528
    %v530 = vpack.c.bf16 %v517, %v515
    %v531 = vpack.c.bf16 %v521, %v519
    %v532 = vpack.c.bf16 %v525, %v523
    %v533 = vpack.c.bf16 %v529, %v527
    %534 = vrot.lane.b32.xlu0 %v237, 64
    %v535 = vpop.permute.xlu0 %534
    %v538 = vsel %vm56, %v530, 0
    %540 = vmatprep.subr.bf16.mxu0 0
    %541 = vmatpush1.bf16.msra.mxu0 0
    %542 = vmatprep.subr.bf16.mxu0 0
    %543 = vmatpush1.bf16.msra.mxu0 0
    %544 = vmatprep.subr.bf16.mxu0 0
    %545 = vmatpush1.bf16.msra.mxu0 0
    %546 = vmatprep.subr.bf16.mxu0 0
    %547 = vmatpush1.bf16.msra.mxu0 0
    %548 = vmatprep.subr.bf16.mxu0 0
    %549 = vmatpush1.bf16.msra.mxu0 0
    %550 = vmatprep.subr.bf16.mxu0 0
    %551 = vmatpush1.bf16.msra.mxu0 0
    %552 = vmatprep.subr.bf16.mxu0 0
    %553 = vmatpush1.bf16.msra.mxu0 0
    %554 = vmatprep.subr.bf16.mxu0 0
    %555 = vmatpush1.bf16.msra.mxu0 %v535
    %556 = vmatprep.subr.bf16.mxu0 0
    %557 = vmatpush2.bf16.msra.mxu0 0
    %558 = vmatprep.subr.bf16.mxu0 0
    %559 = vmatpush2.bf16.msra.mxu0 0
    %560 = vmatprep.subr.bf16.mxu0 0
    %561 = vmatpush2.bf16.msra.mxu0 0
    %562 = vmatprep.subr.bf16.mxu0 0
    %563 = vmatpush2.bf16.msra.mxu0 0
    %564 = vmatprep.subr.bf16.mxu0 0
    %565 = vmatpush2.bf16.msra.mxu0 0
    %566 = vmatprep.subr.bf16.mxu0 0
    %567 = vmatpush2.bf16.msra.mxu0 0
    %568 = vmatprep.subr.bf16.mxu0 0
    %569 = vmatpush2.bf16.msra.mxu0 0
    %570 = vmatprep.subr.bf16.mxu0 0
    %571 = vmatpush2.bf16.msra.mxu0 0
    %572 = vmatprep.mubr.bf16.mxu0 0
    %573 = vmatmul.mubr.bf16.gmra.mxu0 %v538
    %v574 = vpop.f32.mrf.mxu0
    %v575 = vadd.f32 0.0, %v574
    %v576 = vpop.f32.mrf.mxu0
    %v577 = vpop.f32.mrf.mxu0
    %v578 = vadd.f32 0.0, %v577
    %v579 = vpop.f32.mrf.mxu0
    %580 = vdwg.mxu0
    %581 = vrot.lane.b32.xlu0 %v238, 64
    %v582 = vpop.permute.xlu0 %581
    %v585 = vsel %vm56, %v531, 0
    %587 = vmatprep.subr.bf16.mxu0 0
    %588 = vmatpush1.bf16.msra.mxu0 0
    %589 = vmatprep.subr.bf16.mxu0 0
    %590 = vmatpush1.bf16.msra.mxu0 0
    %591 = vmatprep.subr.bf16.mxu0 0
    %592 = vmatpush1.bf16.msra.mxu0 0
    %593 = vmatprep.subr.bf16.mxu0 0
    %594 = vmatpush1.bf16.msra.mxu0 0
    %595 = vmatprep.subr.bf16.mxu0 0
    %596 = vmatpush1.bf16.msra.mxu0 0
    %597 = vmatprep.subr.bf16.mxu0 0
    %598 = vmatpush1.bf16.msra.mxu0 0
    %599 = vmatprep.subr.bf16.mxu0 0
    %600 = vmatpush1.bf16.msra.mxu0 0
    %601 = vmatprep.subr.bf16.mxu0 0
    %602 = vmatpush1.bf16.msra.mxu0 %v582
    %603 = vmatprep.subr.bf16.mxu0 0
    %604 = vmatpush2.bf16.msra.mxu0 0
    %605 = vmatprep.subr.bf16.mxu0 0
    %606 = vmatpush2.bf16.msra.mxu0 0
    %607 = vmatprep.subr.bf16.mxu0 0
    %608 = vmatpush2.bf16.msra.mxu0 0
    %609 = vmatprep.subr.bf16.mxu0 0
    %610 = vmatpush2.bf16.msra.mxu0 0
    %611 = vmatprep.subr.bf16.mxu0 0
    %612 = vmatpush2.bf16.msra.mxu0 0
    %613 = vmatprep.subr.bf16.mxu0 0
    %614 = vmatpush2.bf16.msra.mxu0 0
    %615 = vmatprep.subr.bf16.mxu0 0
    %616 = vmatpush2.bf16.msra.mxu0 0
    %617 = vmatprep.subr.bf16.mxu0 0
    %618 = vmatpush2.bf16.msra.mxu0 0
    %619 = vmatprep.mubr.bf16.mxu0 0
    %620 = vmatmul.mubr.bf16.gmra.mxu0 %v585
    %v621 = vpop.f32.mrf.mxu0
    %v622 = vadd.f32 0.0, %v621
    %v623 = vpop.f32.mrf.mxu0
    %v624 = vpop.f32.mrf.mxu0
    %v625 = vadd.f32 0.0, %v624
    %v626 = vpop.f32.mrf.mxu0
    %627 = vdwg.mxu0
    %628 = vrot.lane.b32.xlu0 %v239, 64
    %v629 = vpop.permute.xlu0 %628
    %v632 = vsel %vm56, %v532, 0
    %634 = vmatprep.subr.bf16.mxu0 0
    %635 = vmatpush1.bf16.msra.mxu0 0
    %636 = vmatprep.subr.bf16.mxu0 0
    %637 = vmatpush1.bf16.msra.mxu0 0
    %638 = vmatprep.subr.bf16.mxu0 0
    %639 = vmatpush1.bf16.msra.mxu0 0
    %640 = vmatprep.subr.bf16.mxu0 0
    %641 = vmatpush1.bf16.msra.mxu0 0
    %642 = vmatprep.subr.bf16.mxu0 0
    %643 = vmatpush1.bf16.msra.mxu0 0
    %644 = vmatprep.subr.bf16.mxu0 0
    %645 = vmatpush1.bf16.msra.mxu0 0
    %646 = vmatprep.subr.bf16.mxu0 0
    %647 = vmatpush1.bf16.msra.mxu0 0
    %648 = vmatprep.subr.bf16.mxu0 0
    %649 = vmatpush1.bf16.msra.mxu0 %v629
    %650 = vmatprep.subr.bf16.mxu0 0
    %651 = vmatpush2.bf16.msra.mxu0 0
    %652 = vmatprep.subr.bf16.mxu0 0
    %653 = vmatpush2.bf16.msra.mxu0 0
    %654 = vmatprep.subr.bf16.mxu0 0
    %655 = vmatpush2.bf16.msra.mxu0 0
    %656 = vmatprep.subr.bf16.mxu0 0
    %657 = vmatpush2.bf16.msra.mxu0 0
    %658 = vmatprep.subr.bf16.mxu0 0
    %659 = vmatpush2.bf16.msra.mxu0 0
    %660 = vmatprep.subr.bf16.mxu0 0
    %661 = vmatpush2.bf16.msra.mxu0 0
    %662 = vmatprep.subr.bf16.mxu0 0
    %663 = vmatpush2.bf16.msra.mxu0 0
    %664 = vmatprep.subr.bf16.mxu0 0
    %665 = vmatpush2.bf16.msra.mxu0 0
    %666 = vmatprep.mubr.bf16.mxu0 0
    %667 = vmatmul.mubr.bf16.gmra.mxu0 %v632
    %v668 = vpop.f32.mrf.mxu0
    %v669 = vadd.f32 0.0, %v668
    %v670 = vpop.f32.mrf.mxu0
    %v671 = vpop.f32.mrf.mxu0
    %v672 = vadd.f32 0.0, %v671
    %v673 = vpop.f32.mrf.mxu0
    %674 = vdwg.mxu0
    %675 = vrot.lane.b32.xlu0 %v240, 64
    %v676 = vpop.permute.xlu0 %675
    %v679 = vsel %vm56, %v533, 0
    %681 = vmatprep.subr.bf16.mxu0 0
    %682 = vmatpush1.bf16.msra.mxu0 0
    %683 = vmatprep.subr.bf16.mxu0 0
    %684 = vmatpush1.bf16.msra.mxu0 0
    %685 = vmatprep.subr.bf16.mxu0 0
    %686 = vmatpush1.bf16.msra.mxu0 0
    %687 = vmatprep.subr.bf16.mxu0 0
    %688 = vmatpush1.bf16.msra.mxu0 0
    %689 = vmatprep.subr.bf16.mxu0 0
    %690 = vmatpush1.bf16.msra.mxu0 0
    %691 = vmatprep.subr.bf16.mxu0 0
    %692 = vmatpush1.bf16.msra.mxu0 0
    %693 = vmatprep.subr.bf16.mxu0 0
    %694 = vmatpush1.bf16.msra.mxu0 0
    %695 = vmatprep.subr.bf16.mxu0 0
    %696 = vmatpush1.bf16.msra.mxu0 %v676
    %697 = vmatprep.subr.bf16.mxu0 0
    %698 = vmatpush2.bf16.msra.mxu0 0
    %699 = vmatprep.subr.bf16.mxu0 0
    %700 = vmatpush2.bf16.msra.mxu0 0
    %701 = vmatprep.subr.bf16.mxu0 0
    %702 = vmatpush2.bf16.msra.mxu0 0
    %703 = vmatprep.subr.bf16.mxu0 0
    %704 = vmatpush2.bf16.msra.mxu0 0
    %705 = vmatprep.subr.bf16.mxu0 0
    %706 = vmatpush2.bf16.msra.mxu0 0
    %707 = vmatprep.subr.bf16.mxu0 0
    %708 = vmatpush2.bf16.msra.mxu0 0
    %709 = vmatprep.subr.bf16.mxu0 0
    %710 = vmatpush2.bf16.msra.mxu0 0
    %711 = vmatprep.subr.bf16.mxu0 0
    %712 = vmatpush2.bf16.msra.mxu0 0
    %713 = vmatprep.mubr.bf16.mxu0 0
    %714 = vmatmul.mubr.bf16.gmra.mxu0 %v679
    %v715 = vpop.f32.mrf.mxu0
    %v716 = vadd.f32 0.0, %v715
    %v717 = vpop.f32.mrf.mxu0
    %v718 = vpop.f32.mrf.mxu0
    %v719 = vadd.f32 0.0, %v718
    %v720 = vpop.f32.mrf.mxu0
    %721 = vdwg.mxu0
    %724 = vrot.lane.b32.xlu0 %v622, 8
    %v725 = vpop.permute.xlu0 %724
    %726 = vrot.lane.b32.xlu0 %v625, 8
    %v727 = vpop.permute.xlu0 %726
    %732 = vrot.lane.b32.xlu0 %v669, 16
    %v733 = vpop.permute.xlu0 %732
    %734 = vrot.lane.b32.xlu0 %v672, 16
    %v735 = vpop.permute.xlu0 %734
    %740 = vrot.lane.b32.xlu0 %v716, 24
    %v741 = vpop.permute.xlu0 %740
    %742 = vrot.lane.b32.xlu0 %v719, 24
    %v743 = vpop.permute.xlu0 %742
    %v746 = vsel %vm244, %v575, %v725
    %v747 = vsel %vm244, %v578, %v727
    %v748 = vsel %vm56, %v746, %v733
    %v749 = vsel %vm56, %v747, %v735
    %vm750 = vcmask 195584
    %v751 = vsel %vm750, %v748, %v741
    %v752 = vsel %vm750, %v749, %v743
    %v753 = vld [vmem:[#allocation5 + $0x18] sm:$0xf]
    %v754 = vld [vmem:[#allocation5 + $0x1c] sm:$0xf]
    %v755 = vld [vmem:[#allocation5 + $0x20] sm:$0xf]
    %v756 = vld [vmem:[#allocation5 + $0x24] sm:$0xf]
    %v757 = vpack.c.bf16 %v752, %v751
    %v758 = vlaneseq
    %v759 = vshrl.u32 %v758, 7
    %v760 = vsub.s32 0, %v759
    %v761 = vrot.slane %v104, %v760
    %v766 = vunpack.c.l.b16 %v753
    %v767 = vunpack.c.l.b16 %v754
    %v768 = vunpack.c.l.b16 %v755
    %v769 = vunpack.c.l.b16 %v756
    %v770 = vpack.c.b16 %v767, %v766
    %v771 = vpack.c.b16 %v769, %v768
    %v775 = vsel %vm109, %v757, 0
    %777 = vmatprep.subr.bf16.mxu0 0
    %778 = vmatpush1.bf16.msra.mxu0 0
    %779 = vmatprep.subr.bf16.mxu0 0
    %780 = vmatpush1.bf16.msra.mxu0 0
    %781 = vmatprep.subr.bf16.mxu0 0
    %782 = vmatpush1.bf16.msra.mxu0 0
    %783 = vmatprep.subr.bf16.mxu0 0
    %784 = vmatpush1.bf16.msra.mxu0 0
    %785 = vmatprep.subr.bf16.mxu0 0
    %786 = vmatpush1.bf16.msra.mxu0 0
    %787 = vmatprep.subr.bf16.mxu0 0
    %788 = vmatpush1.bf16.msra.mxu0 0
    %789 = vmatprep.subr.bf16.mxu0 0
    %790 = vmatpush1.bf16.msra.mxu0 %v771
    %791 = vmatprep.subr.bf16.mxu0 0
    %792 = vmatpush1.bf16.msra.mxu0 %v770
    %793 = vmatprep.subr.bf16.mxu0 0
    %794 = vmatpush2.bf16.msra.mxu0 0
    %795 = vmatprep.subr.bf16.mxu0 0
    %796 = vmatpush2.bf16.msra.mxu0 0
    %797 = vmatprep.subr.bf16.mxu0 0
    %798 = vmatpush2.bf16.msra.mxu0 0
    %799 = vmatprep.subr.bf16.mxu0 0
    %800 = vmatpush2.bf16.msra.mxu0 0
    %801 = vmatprep.subr.bf16.mxu0 0
    %802 = vmatpush2.bf16.msra.mxu0 0
    %803 = vmatprep.subr.bf16.mxu0 0
    %804 = vmatpush2.bf16.msra.mxu0 0
    %805 = vmatprep.subr.bf16.mxu0 0
    %806 = vmatpush2.bf16.msra.mxu0 0
    %807 = vmatprep.subr.bf16.mxu0 0
    %808 = vmatpush2.bf16.msra.mxu0 0
    %809 = vmatprep.mubr.bf16.mxu0 0
    %810 = vmatmul.mubr.bf16.gmra.mxu0 %v775
    %v811 = vpop.f32.mrf.mxu0
    %v812 = vadd.f32 %v761, %v811
    %v813 = vpop.f32.mrf.mxu0
    %v814 = vpop.f32.mrf.mxu0
    %v815 = vadd.f32 %v761, %v814
    %v816 = vpop.f32.mrf.mxu0
    %817 = vdwg.mxu0
    %v818 = vadd.f32 %v150, %v812
    %v819 = vadd.f32 %v151, %v815
    %v820 = vsel %vm109, %v818, 0.0
    %821 = vadd.xlane.f32.xlu0 %v820
    %v822 = vpop.xlane.xlu0 %821
    %v823 = vsel %vm109, %v819, 0.0
    %824 = vadd.xlane.f32.xlu0 %v823
    %v825 = vpop.xlane.xlu0 %824
    %v826 = vmul.f32 %v818, %v818
    %v827 = vmul.f32 %v819, %v819
    %v828 = vsel %vm109, %v826, 0.0
    %829 = vadd.xlane.f32.xlu0 %v828
    %v830 = vpop.xlane.xlu0 %829
    %v831 = vsel %vm109, %v827, 0.0
    %832 = vadd.xlane.f32.xlu0 %v831
    %v833 = vpop.xlane.xlu0 %832
    %v834 = vmul.f32 %v822, 0.03125
    %v835 = vmul.f32 %v825, 0.03125
    %v836 = vmul.f32 %v830, 0.03125
    %v837 = vmul.f32 %v833, 0.03125
    %v838 = vmul.f32 %v834, %v834
    %v839 = vmul.f32 %v835, %v835
    %v840 = vsub.f32 %v836, %v838
    %v841 = vsub.f32 %v837, %v839
    %v842 = vsub.f32 %v818, %v834
    %v843 = vsub.f32 %v819, %v835
    %v844 = vadd.f32 %v840, 1e-05
    %v845 = vadd.f32 %v841, 1e-05
    %v846 = vrsqrt.pop %v844
    %v847 = vrsqrt.pop %v845
    %v848 = vmul.f32 %v842, %v846
    %v849 = vmul.f32 %v843, %v847
    %v850 = vlaneseq
    %v851 = vshrl.u32 %v850, 7
    %v852 = vsub.s32 0, %v851
    %v853 = vrot.slane %v105, %v852
    %v854 = vmul.f32 %v848, %v853
    %v855 = vmul.f32 %v849, %v853
    %v856 = vlaneseq
    %v857 = vshrl.u32 %v856, 7
    %v858 = vsub.s32 0, %v857
    %v859 = vrot.slane %v106, %v858
    %v860 = vadd.f32 %v854, %v859
    %v861 = vadd.f32 %v855, %v859
    %v862 = vld [vmem:[#allocation5 + $0x28] sm:$0xf]
    %v863 = vld [vmem:[#allocation5 + $0x2c] sm:$0xf]
    %v864 = vld [vmem:[#allocation5 + $0x30] sm:$0xf]
    %v865 = vld [vmem:[#allocation5 + $0x34] sm:$0xf]
    %v866 = vpack.c.bf16 %v861, %v860
    %v867 = vlaneseq
    %v868 = vshrl.u32 %v867, 7
    %v869 = vsub.s32 0, %v868
    %v870 = vrot.slane %v107, %v869
    %v875 = vunpack.c.l.b16 %v862
    %v876 = vunpack.c.l.b16 %v863
    %v877 = vunpack.c.l.b16 %v864
    %v878 = vunpack.c.l.b16 %v865
    %v879 = vpack.c.b16 %v876, %v875
    %v880 = vpack.c.b16 %v878, %v877
    %v884 = vsel %vm109, %v866, 0
    %886 = vmatprep.subr.bf16.mxu0 0
    %887 = vmatpush1.bf16.msra.mxu0 0
    %888 = vmatprep.subr.bf16.mxu0 0
    %889 = vmatpush1.bf16.msra.mxu0 0
    %890 = vmatprep.subr.bf16.mxu0 0
    %891 = vmatpush1.bf16.msra.mxu0 0
    %892 = vmatprep.subr.bf16.mxu0 0
    %893 = vmatpush1.bf16.msra.mxu0 0
    %894 = vmatprep.subr.bf16.mxu0 0
    %895 = vmatpush1.bf16.msra.mxu0 0
    %896 = vmatprep.subr.bf16.mxu0 0
    %897 = vmatpush1.bf16.msra.mxu0 0
    %898 = vmatprep.subr.bf16.mxu0 0
    %899 = vmatpush1.bf16.msra.mxu0 %v880
    %900 = vmatprep.subr.bf16.mxu0 0
    %901 = vmatpush1.bf16.msra.mxu0 %v879
    %902 = vmatprep.subr.bf16.mxu0 0
    %903 = vmatpush2.bf16.msra.mxu0 0
    %904 = vmatprep.subr.bf16.mxu0 0
    %905 = vmatpush2.bf16.msra.mxu0 0
    %906 = vmatprep.subr.bf16.mxu0 0
    %907 = vmatpush2.bf16.msra.mxu0 0
    %908 = vmatprep.subr.bf16.mxu0 0
    %909 = vmatpush2.bf16.msra.mxu0 0
    %910 = vmatprep.subr.bf16.mxu0 0
    %911 = vmatpush2.bf16.msra.mxu0 0
    %912 = vmatprep.subr.bf16.mxu0 0
    %913 = vmatpush2.bf16.msra.mxu0 0
    %914 = vmatprep.subr.bf16.mxu0 0
    %915 = vmatpush2.bf16.msra.mxu0 0
    %916 = vmatprep.subr.bf16.mxu0 0
    %917 = vmatpush2.bf16.msra.mxu0 0
    %918 = vmatprep.mubr.bf16.mxu0 0
    %919 = vmatmul.mubr.bf16.gmra.mxu0 %v884
    %v920 = vpop.f32.mrf.mxu0
    %v921 = vadd.f32 %v870, %v920
    %v922 = vpop.f32.mrf.mxu0
    %v923 = vpop.f32.mrf.mxu0
    %v924 = vadd.f32 %v870, %v923
    %v925 = vpop.f32.mrf.mxu0
    %926 = vdwg.mxu0
    %v927 = vmul.f32 %v921, 0.5
    %v928 = vmul.f32 %v924, 0.5
    %v929 = vmul.f32 %v921, %v921
    %v930 = vmul.f32 %v924, %v924
    %v931 = vmul.f32 %v921, %v929
    %v932 = vmul.f32 %v924, %v930
    %v933 = vmul.f32 %v931, 0.044715
    %v934 = vmul.f32 %v932, 0.044715
    %v935 = vadd.f32 %v921, %v933
    %v936 = vadd.f32 %v924, %v934
    %v937 = vmul.f32 %v935, 0.7978846
    %v938 = vmul.f32 %v936, 0.7978846
    %v939 = vtanh.pop %v937
    %v940 = vtanh.pop %v938
    %v941 = vadd.f32 %v939, 1.0
    %v942 = vadd.f32 %v940, 1.0
    %v943 = vmul.f32 %v927, %v941
    %v944 = vmul.f32 %v928, %v942
    %v945 = vld [vmem:[#allocation5 + $0x38] sm:$0xf]
    %v946 = vld [vmem:[#allocation5 + $0x3c] sm:$0xf]
    %v947 = vld [vmem:[#allocation5 + $0x40] sm:$0xf]
    %v948 = vld [vmem:[#allocation5 + $0x44] sm:$0xf]
    %v949 = vld [vmem:[#allocation5 + $0x48] sm:$0xf]
    %v950 = vld [vmem:[#allocation5 + $0x4c] sm:$0xf]
    %v951 = vld [vmem:[#allocation5 + $0x50] sm:$0xf]
    %v952 = vld [vmem:[#allocation5 + $0x54] sm:$0xf]
    %v953 = vld [vmem:[#allocation5 + $0x58] sm:$0xf]
    %v954 = vld [vmem:[#allocation5 + $0x5c] sm:$0xf]
    %v955 = vld [vmem:[#allocation5 + $0x60] sm:$0xf]
    %v956 = vld [vmem:[#allocation5 + $0x64] sm:$0xf]
    %v957 = vld [vmem:[#allocation5 + $0x68] sm:$0xf]
    %v958 = vld [vmem:[#allocation5 + $0x6c] sm:$0xf]
    %v959 = vld [vmem:[#allocation5 + $0x70] sm:$0xf]
    %v960 = vld [vmem:[#allocation5 + $0x74] sm:$0xf]
    %v961 = vpack.c.bf16 %v944, %v943
    %v962 = vlaneseq
    %v963 = vshrl.u32 %v962, 7
    %v964 = vsub.s32 0, %v963
    %v965 = vrot.slane %v108, %v964
    %v982 = vunpack.c.l.b16 %v945
    %v983 = vunpack.c.l.b16 %v946
    %v984 = vunpack.c.l.b16 %v947
    %v985 = vunpack.c.l.b16 %v948
    %v986 = vunpack.c.l.b16 %v949
    %v987 = vunpack.c.l.b16 %v950
    %v988 = vunpack.c.l.b16 %v951
    %v989 = vunpack.c.l.b16 %v952
    %v990 = vunpack.c.l.b16 %v953
    %v991 = vunpack.c.l.b16 %v954
    %v992 = vunpack.c.l.b16 %v955
    %v993 = vunpack.c.l.b16 %v956
    %v994 = vunpack.c.l.b16 %v957
    %v995 = vunpack.c.l.b16 %v958
    %v996 = vunpack.c.l.b16 %v959
    %v997 = vunpack.c.l.b16 %v960
    %v998 = vpack.c.b16 %v983, %v982
    %v999 = vpack.c.b16 %v985, %v984
    %v1000 = vpack.c.b16 %v987, %v986
    %v1001 = vpack.c.b16 %v989, %v988
    %v1002 = vpack.c.b16 %v991, %v990
    %v1003 = vpack.c.b16 %v993, %v992
    %v1004 = vpack.c.b16 %v995, %v994
    %v1005 = vpack.c.b16 %v997, %v996
    %1014 = vmatprep.subr.bf16.mxu0 0
    %1015 = vmatpush1.bf16.msra.mxu0 %v1005
    %1016 = vmatprep.subr.bf16.mxu0 0
    %1017 = vmatpush1.bf16.msra.mxu0 %v1004
    %1018 = vmatprep.subr.bf16.mxu0 0
    %1019 = vmatpush1.bf16.msra.mxu0 %v1003
    %1020 = vmatprep.subr.bf16.mxu0 0
    %1021 = vmatpush1.bf16.msra.mxu0 %v1002
    %1022 = vmatprep.subr.bf16.mxu0 0
    %1023 = vmatpush1.bf16.msra.mxu0 %v1001
    %1024 = vmatprep.subr.bf16.mxu0 0
    %1025 = vmatpush1.bf16.msra.mxu0 %v1000
    %1026 = vmatprep.subr.bf16.mxu0 0
    %1027 = vmatpush1.bf16.msra.mxu0 %v999
    %1028 = vmatprep.subr.bf16.mxu0 0
    %1029 = vmatpush1.bf16.msra.mxu0 %v998
    %1030 = vmatprep.subr.bf16.mxu0 0
    %1031 = vmatpush2.bf16.msra.mxu0 0
    %1032 = vmatprep.subr.bf16.mxu0 0
    %1033 = vmatpush2.bf16.msra.mxu0 0
    %1034 = vmatprep.subr.bf16.mxu0 0
    %1035 = vmatpush2.bf16.msra.mxu0 0
    %1036 = vmatprep.subr.bf16.mxu0 0
    %1037 = vmatpush2.bf16.msra.mxu0 0
    %1038 = vmatprep.subr.bf16.mxu0 0
    %1039 = vmatpush2.bf16.msra.mxu0 0
    %1040 = vmatprep.subr.bf16.mxu0 0
    %1041 = vmatpush2.bf16.msra.mxu0 0
    %1042 = vmatprep.subr.bf16.mxu0 0
    %1043 = vmatpush2.bf16.msra.mxu0 0
    %1044 = vmatprep.subr.bf16.mxu0 0
    %1045 = vmatpush2.bf16.msra.mxu0 0
    %1046 = vmatprep.mubr.bf16.mxu0 0
    %1047 = vmatmul.mubr.bf16.gmra.mxu0 %v961
    %v1048 = vpop.f32.mrf.mxu0
    %v1049 = vadd.f32 %v965, %v1048
    %v1050 = vpop.f32.mrf.mxu0
    %v1051 = vpop.f32.mrf.mxu0
    %v1052 = vadd.f32 %v965, %v1051
    %v1053 = vpop.f32.mrf.mxu0
    %1054 = vdwg.mxu0
    %v1055 = vadd.f32 %v818, %v1049
    %v1056 = vadd.f32 %v819, %v1052
    %v1057 = vld [vmem:[#allocation2 + $0x38] sm:$0x1]
    %v1058 = vld [vmem:[#allocation2 + $0x39] sm:$0x1]
    %v1059 = vld [vmem:[#allocation2 + $0x3a] sm:$0x1]
    %v1060 = vld [vmem:[#allocation2 + $0x3b] sm:$0x1]
    %v1061 = vld [vmem:[#allocation2 + $0x3c] sm:$0x1]
    %v1062 = vld [vmem:[#allocation2 + $0x3d] sm:$0x1]
    %v1063 = vld [vmem:[#allocation2 + $0x3e] sm:$0x1]
    %v1064 = vld [vmem:[#allocation2 + $0x3f] sm:$0x1]
    %v1065 = vsel %vm109, %v1055, 0.0
    %1066 = vadd.xlane.f32.xlu0 %v1065
    %v1067 = vpop.xlane.xlu0 %1066
    %v1068 = vsel %vm109, %v1056, 0.0
    %1069 = vadd.xlane.f32.xlu0 %v1068
    %v1070 = vpop.xlane.xlu0 %1069
    %v1071 = vmul.f32 %v1055, %v1055
    %v1072 = vmul.f32 %v1056, %v1056
    %v1073 = vsel %vm109, %v1071, 0.0
    %1074 = vadd.xlane.f32.xlu0 %v1073
    %v1075 = vpop.xlane.xlu0 %1074
    %v1076 = vsel %vm109, %v1072, 0.0
    %1077 = vadd.xlane.f32.xlu0 %v1076
    %v1078 = vpop.xlane.xlu0 %1077
    %v1079 = vmul.f32 %v1067, 0.03125
    %v1080 = vmul.f32 %v1070, 0.03125
    %v1081 = vmul.f32 %v1075, 0.03125
    %v1082 = vmul.f32 %v1078, 0.03125
    %v1083 = vmul.f32 %v1079, %v1079
    %v1084 = vmul.f32 %v1080, %v1080
    %v1085 = vsub.f32 %v1081, %v1083
    %v1086 = vsub.f32 %v1082, %v1084
    %v1087 = vsub.f32 %v1055, %v1079
    %v1088 = vsub.f32 %v1056, %v1080
    %v1089 = vadd.f32 %v1085, 1e-05
    %v1090 = vadd.f32 %v1086, 1e-05
    %v1091 = vrsqrt.pop %v1089
    %v1092 = vrsqrt.pop %v1090
    %v1093 = vmul.f32 %v1087, %v1091
    %v1094 = vmul.f32 %v1088, %v1092
    %v1095 = vlaneseq
    %v1096 = vshrl.u32 %v1095, 7
    %v1097 = vsub.s32 0, %v1096
    %v1098 = vrot.slane %v1057, %v1097
    %v1099 = vmul.f32 %v1093, %v1098
    %v1100 = vmul.f32 %v1094, %v1098
    %v1101 = vlaneseq
    %v1102 = vshrl.u32 %v1101, 7
    %v1103 = vsub.s32 0, %v1102
    %v1104 = vrot.slane %v1058, %v1103
    %v1105 = vadd.f32 %v1099, %v1104
    %v1106 = vadd.f32 %v1100, %v1104
    %v1107 = vld [vmem:[#allocation5 + $0x78] sm:$0xf]
    %v1108 = vld [vmem:[#allocation5 + $0x7c] sm:$0xf]
    %v1109 = vld [vmem:[#allocation5 + $0x80] sm:$0xf]
    %v1110 = vld [vmem:[#allocation5 + $0x84] sm:$0xf]
    %v1111 = vpack.c.bf16 %v1106, %v1105
    %v1112 = vlaneseq
    %v1113 = vshrl.u32 %v1112, 7
    %v1114 = vsub.s32 0, %v1113
    %v1115 = vrot.slane %v1059, %v1114
    %v1120 = vunpack.c.l.b16 %v1107
    %v1121 = vunpack.c.l.b16 %v1108
    %v1122 = vunpack.c.l.b16 %v1109
    %v1123 = vunpack.c.l.b16 %v1110
    %v1124 = vpack.c.b16 %v1121, %v1120
    %v1125 = vpack.c.b16 %v1123, %v1122
    %v1129 = vsel %vm109, %v1111, 0
    %1131 = vmatprep.subr.bf16.mxu0 0
    %1132 = vmatpush1.bf16.msra.mxu0 0
    %1133 = vmatprep.subr.bf16.mxu0 0
    %1134 = vmatpush1.bf16.msra.mxu0 0
    %1135 = vmatprep.subr.bf16.mxu0 0
    %1136 = vmatpush1.bf16.msra.mxu0 0
    %1137 = vmatprep.subr.bf16.mxu0 0
    %1138 = vmatpush1.bf16.msra.mxu0 0
    %1139 = vmatprep.subr.bf16.mxu0 0
    %1140 = vmatpush1.bf16.msra.mxu0 0
    %1141 = vmatprep.subr.bf16.mxu0 0
    %1142 = vmatpush1.bf16.msra.mxu0 0
    %1143 = vmatprep.subr.bf16.mxu0 0
    %1144 = vmatpush1.bf16.msra.mxu0 %v1125
    %1145 = vmatprep.subr.bf16.mxu0 0
    %1146 = vmatpush1.bf16.msra.mxu0 %v1124
    %1147 = vmatprep.subr.bf16.mxu0 0
    %1148 = vmatpush2.bf16.msra.mxu0 0
    %1149 = vmatprep.subr.bf16.mxu0 0
    %1150 = vmatpush2.bf16.msra.mxu0 0
    %1151 = vmatprep.subr.bf16.mxu0 0
    %1152 = vmatpush2.bf16.msra.mxu0 0
    %1153 = vmatprep.subr.bf16.mxu0 0
    %1154 = vmatpush2.bf16.msra.mxu0 0
    %1155 = vmatprep.subr.bf16.mxu0 0
    %1156 = vmatpush2.bf16.msra.mxu0 0
    %1157 = vmatprep.subr.bf16.mxu0 0
    %1158 = vmatpush2.bf16.msra.mxu0 0
    %1159 = vmatprep.subr.bf16.mxu0 0
    %1160 = vmatpush2.bf16.msra.mxu0 0
    %1161 = vmatprep.subr.bf16.mxu0 0
    %1162 = vmatpush2.bf16.msra.mxu0 0
    %1163 = vmatprep.mubr.bf16.mxu0 0
    %1164 = vmatmul.mubr.bf16.gmra.mxu0 %v1129
    %v1165 = vpop.f32.mrf.mxu0
    %v1166 = vadd.f32 %v1115, %v1165
    %v1167 = vpop.f32.mrf.mxu0
    %v1168 = vpop.f32.mrf.mxu0
    %v1169 = vadd.f32 %v1115, %v1168
    %v1170 = vpop.f32.mrf.mxu0
    %1171 = vdwg.mxu0
    %1174 = vrot.lane.b32.xlu0 %v1166, 120
    %v1175 = vpop.permute.xlu0 %1174
    %1176 = vrot.lane.b32.xlu0 %v1169, 120
    %v1177 = vpop.permute.xlu0 %1176
    %1180 = vrot.lane.b32.xlu0 %v1166, 112
    %v1181 = vpop.permute.xlu0 %1180
    %1182 = vrot.lane.b32.xlu0 %v1169, 112
    %v1183 = vpop.permute.xlu0 %1182
    %1186 = vrot.lane.b32.xlu0 %v1166, 104
    %v1187 = vpop.permute.xlu0 %1186
    %1188 = vrot.lane.b32.xlu0 %v1169, 104
    %v1189 = vpop.permute.xlu0 %1188
    %v1192 = vpack.c.bf16 %v1169, %v1166
    %v1193 = vpack.c.bf16 %v1177, %v1175
    %v1194 = vpack.c.bf16 %v1183, %v1181
    %v1195 = vpack.c.bf16 %v1189, %v1187
    %1197 = vrot.lane.b32.xlu0 %v1192, 96
    %v1198 = vpop.permute.xlu0 %1197
    %v1200 = vsel %vm244, %v1192, 0
    %v1203 = vsel %vm244, %v1198, 0
    %1205 = vmatprep.subr.bf16.mxu0 0
    %1206 = vmatpush1.bf16.xpose.msra.mxu0 0
    %1207 = vmatprep.subr.bf16.mxu0 0
    %1208 = vmatpush1.bf16.xpose.msra.mxu0 0
    %1209 = vmatprep.subr.bf16.mxu0 0
    %1210 = vmatpush1.bf16.xpose.msra.mxu0 0
    %1211 = vmatprep.subr.bf16.mxu0 0
    %1212 = vmatpush1.bf16.xpose.msra.mxu0 0
    %1213 = vmatprep.subr.bf16.mxu0 0
    %1214 = vmatpush1.bf16.xpose.msra.mxu0 0
    %1215 = vmatprep.subr.bf16.mxu0 0
    %1216 = vmatpush1.bf16.xpose.msra.mxu0 0
    %1217 = vmatprep.subr.bf16.mxu0 0
    %1218 = vmatpush1.bf16.xpose.msra.mxu0 0
    %1219 = vmatprep.subr.bf16.mxu0 0
    %1220 = vmatpush1.bf16.xpose.msra.mxu0 %v1203
    %1221 = vmatprep.subr.bf16.mxu0 0
    %1222 = vmatpush2.bf16.xpose.msra.mxu0 0
    %1223 = vmatprep.subr.bf16.mxu0 0
    %1224 = vmatpush2.bf16.xpose.msra.mxu0 0
    %1225 = vmatprep.subr.bf16.mxu0 0
    %1226 = vmatpush2.bf16.xpose.msra.mxu0 0
    %1227 = vmatprep.subr.bf16.mxu0 0
    %1228 = vmatpush2.bf16.xpose.msra.mxu0 0
    %1229 = vmatprep.subr.bf16.mxu0 0
    %1230 = vmatpush2.bf16.xpose.msra.mxu0 0
    %1231 = vmatprep.subr.bf16.mxu0 0
    %1232 = vmatpush2.bf16.xpose.msra.mxu0 0
    %1233 = vmatprep.subr.bf16.mxu0 0
    %1234 = vmatpush2.bf16.xpose.msra.mxu0 0
    %1235 = vmatprep.subr.bf16.mxu0 0
    %1236 = vmatpush2.bf16.xpose.msra.mxu0 0
    %1237 = vmatprep.mubr.bf16.mxu0 0
    %1238 = vmatmul.mubr.bf16.gmra.mxu0 %v1200
    %v1239 = vpop.f32.mrf.mxu0
    %v1240 = vadd.f32 %v43, %v1239
    %v1241 = vpop.f32.mrf.mxu0
    %v1242 = vpop.f32.mrf.mxu0
    %v1243 = vadd.f32 %v44, %v1242
    %v1244 = vpop.f32.mrf.mxu0
    %1245 = vdwg.mxu0
    %1247 = vrot.lane.b32.xlu0 %v1193, 96
    %v1248 = vpop.permute.xlu0 %1247
    %v1250 = vsel %vm244, %v1193, 0
    %v1253 = vsel %vm244, %v1248, 0
    %1255 = vmatprep.subr.bf16.mxu0 0
    %1256 = vmatpush1.bf16.xpose.msra.mxu0 0
    %1257 = vmatprep.subr.bf16.mxu0 0
    %1258 = vmatpush1.bf16.xpose.msra.mxu0 0
    %1259 = vmatprep.subr.bf16.mxu0 0
    %1260 = vmatpush1.bf16.xpose.msra.mxu0 0
    %1261 = vmatprep.subr.bf16.mxu0 0
    %1262 = vmatpush1.bf16.xpose.msra.mxu0 0
    %1263 = vmatprep.subr.bf16.mxu0 0
    %1264 = vmatpush1.bf16.xpose.msra.mxu0 0
    %1265 = vmatprep.subr.bf16.mxu0 0
    %1266 = vmatpush1.bf16.xpose.msra.mxu0 0
    %1267 = vmatprep.subr.bf16.mxu0 0
    %1268 = vmatpush1.bf16.xpose.msra.mxu0 0
    %1269 = vmatprep.subr.bf16.mxu0 0
    %1270 = vmatpush1.bf16.xpose.msra.mxu0 %v1253
    %1271 = vmatprep.subr.bf16.mxu0 0
    %1272 = vmatpush2.bf16.xpose.msra.mxu0 0
    %1273 = vmatprep.subr.bf16.mxu0 0
    %1274 = vmatpush2.bf16.xpose.msra.mxu0 0
    %1275 = vmatprep.subr.bf16.mxu0 0
    %1276 = vmatpush2.bf16.xpose.msra.mxu0 0
    %1277 = vmatprep.subr.bf16.mxu0 0
    %1278 = vmatpush2.bf16.xpose.msra.mxu0 0
    %1279 = vmatprep.subr.bf16.mxu0 0
    %1280 = vmatpush2.bf16.xpose.msra.mxu0 0
    %1281 = vmatprep.subr.bf16.mxu0 0
    %1282 = vmatpush2.bf16.xpose.msra.mxu0 0
    %1283 = vmatprep.subr.bf16.mxu0 0
    %1284 = vmatpush2.bf16.xpose.msra.mxu0 0
    %1285 = vmatprep.subr.bf16.mxu0 0
    %1286 = vmatpush2.bf16.xpose.msra.mxu0 0
    %1287 = vmatprep.mubr.bf16.mxu0 0
    %1288 = vmatmul.mubr.bf16.gmra.mxu0 %v1250
    %v1289 = vpop.f32.mrf.mxu0
    %v1290 = vadd.f32 %v43, %v1289
    %v1291 = vpop.f32.mrf.mxu0
    %v1292 = vpop.f32.mrf.mxu0
    %v1293 = vadd.f32 %v44, %v1292
    %v1294 = vpop.f32.mrf.mxu0
    %1295 = vdwg.mxu0
    %1297 = vrot.lane.b32.xlu0 %v1194, 96
    %v1298 = vpop.permute.xlu0 %1297
    %v1300 = vsel %vm244, %v1194, 0
    %v1303 = vsel %vm244, %v1298, 0
    %1305 = vmatprep.subr.bf16.mxu0 0
    %1306 = vmatpush1.bf16.xpose.msra.mxu0 0
    %1307 = vmatprep.subr.bf16.mxu0 0
    %1308 = vmatpush1.bf16.xpose.msra.mxu0 0
    %1309 = vmatprep.subr.bf16.mxu0 0
    %1310 = vmatpush1.bf16.xpose.msra.mxu0 0
    %1311 = vmatprep.subr.bf16.mxu0 0
    %1312 = vmatpush1.bf16.xpose.msra.mxu0 0
    %1313 = vmatprep.subr.bf16.mxu0 0
    %1314 = vmatpush1.bf16.xpose.msra.mxu0 0
    %1315 = vmatprep.subr.bf16.mxu0 0
    %1316 = vmatpush1.bf16.xpose.msra.mxu0 0
    %1317 = vmatprep.subr.bf16.mxu0 0
    %1318 = vmatpush1.bf16.xpose.msra.mxu0 0
    %1319 = vmatprep.subr.bf16.mxu0 0
    %1320 = vmatpush1.bf16.xpose.msra.mxu0 %v1303
    %1321 = vmatprep.subr.bf16.mxu0 0
    %1322 = vmatpush2.bf16.xpose.msra.mxu0 0
    %1323 = vmatprep.subr.bf16.mxu0 0
    %1324 = vmatpush2.bf16.xpose.msra.mxu0 0
    %1325 = vmatprep.subr.bf16.mxu0 0
    %1326 = vmatpush2.bf16.xpose.msra.mxu0 0
    %1327 = vmatprep.subr.bf16.mxu0 0
    %1328 = vmatpush2.bf16.xpose.msra.mxu0 0
    %1329 = vmatprep.subr.bf16.mxu0 0
    %1330 = vmatpush2.bf16.xpose.msra.mxu0 0
    %1331 = vmatprep.subr.bf16.mxu0 0
    %1332 = vmatpush2.bf16.xpose.msra.mxu0 0
    %1333 = vmatprep.subr.bf16.mxu0 0
    %1334 = vmatpush2.bf16.xpose.msra.mxu0 0
    %1335 = vmatprep.subr.bf16.mxu0 0
    %1336 = vmatpush2.bf16.xpose.msra.mxu0 0
    %1337 = vmatprep.mubr.bf16.mxu0 0
    %1338 = vmatmul.mubr.bf16.gmra.mxu0 %v1300
    %v1339 = vpop.f32.mrf.mxu0
    %v1340 = vadd.f32 %v43, %v1339
    %v1341 = vpop.f32.mrf.mxu0
    %v1342 = vpop.f32.mrf.mxu0
    %v1343 = vadd.f32 %v44, %v1342
    %v1344 = vpop.f32.mrf.mxu0
    %1345 = vdwg.mxu0
    %1347 = vrot.lane.b32.xlu0 %v1195, 96
    %v1348 = vpop.permute.xlu0 %1347
    %v1350 = vsel %vm244, %v1195, 0
    %v1353 = vsel %vm244, %v1348, 0
    %1355 = vmatprep.subr.bf16.mxu0 0
    %1356 = vmatpush1.bf16.xpose.msra.mxu0 0
    %1357 = vmatprep.subr.bf16.mxu0 0
    %1358 = vmatpush1.bf16.xpose.msra.mxu0 0
    %1359 = vmatprep.subr.bf16.mxu0 0
    %1360 = vmatpush1.bf16.xpose.msra.mxu0 0
    %1361 = vmatprep.subr.bf16.mxu0 0
    %1362 = vmatpush1.bf16.xpose.msra.mxu0 0
    %1363 = vmatprep.subr.bf16.mxu0 0
    %1364 = vmatpush1.bf16.xpose.msra.mxu0 0
    %1365 = vmatprep.subr.bf16.mxu0 0
    %1366 = vmatpush1.bf16.xpose.msra.mxu0 0
    %1367 = vmatprep.subr.bf16.mxu0 0
    %1368 = vmatpush1.bf16.xpose.msra.mxu0 0
    %1369 = vmatprep.subr.bf16.mxu0 0
    %1370 = vmatpush1.bf16.xpose.msra.mxu0 %v1353
    %1371 = vmatprep.subr.bf16.mxu0 0
    %1372 = vmatpush2.bf16.xpose.msra.mxu0 0
    %1373 = vmatprep.subr.bf16.mxu0 0
    %1374 = vmatpush2.bf16.xpose.msra.mxu0 0
    %1375 = vmatprep.subr.bf16.mxu0 0
    %1376 = vmatpush2.bf16.xpose.msra.mxu0 0
    %1377 = vmatprep.subr.bf16.mxu0 0
    %1378 = vmatpush2.bf16.xpose.msra.mxu0 0
    %1379 = vmatprep.subr.bf16.mxu0 0
    %1380 = vmatpush2.bf16.xpose.msra.mxu0 0
    %1381 = vmatprep.subr.bf16.mxu0 0
    %1382 = vmatpush2.bf16.xpose.msra.mxu0 0
    %1383 = vmatprep.subr.bf16.mxu0 0
    %1384 = vmatpush2.bf16.xpose.msra.mxu0 0
    %1385 = vmatprep.subr.bf16.mxu0 0
    %1386 = vmatpush2.bf16.xpose.msra.mxu0 0
    %1387 = vmatprep.mubr.bf16.mxu0 0
    %1388 = vmatmul.mubr.bf16.gmra.mxu0 %v1350
    %v1389 = vpop.f32.mrf.mxu0
    %v1390 = vadd.f32 %v43, %v1389
    %v1391 = vpop.f32.mrf.mxu0
    %v1392 = vpop.f32.mrf.mxu0
    %v1393 = vadd.f32 %v44, %v1392
    %v1394 = vpop.f32.mrf.mxu0
    %1395 = vdwg.mxu0
    %v1396 = vsel %vm56, %v1240, -inf
    %1397 = vmax.xlane.f32.xlu0 %v1396
    %v1398 = vpop.xlane.xlu0 %1397
    %v1399 = vsel %vm56, %v1243, -inf
    %1400 = vmax.xlane.f32.xlu0 %v1399
    %v1401 = vpop.xlane.xlu0 %1400
    %v1402 = vsel %vm56, %v1290, -inf
    %1403 = vmax.xlane.f32.xlu0 %v1402
    %v1404 = vpop.xlane.xlu0 %1403
    %v1405 = vsel %vm56, %v1293, -inf
    %1406 = vmax.xlane.f32.xlu0 %v1405
    %v1407 = vpop.xlane.xlu0 %1406
    %v1408 = vsel %vm56, %v1340, -inf
    %1409 = vmax.xlane.f32.xlu0 %v1408
    %v1410 = vpop.xlane.xlu0 %1409
    %v1411 = vsel %vm56, %v1343, -inf
    %1412 = vmax.xlane.f32.xlu0 %v1411
    %v1413 = vpop.xlane.xlu0 %1412
    %v1414 = vsel %vm56, %v1390, -inf
    %1415 = vmax.xlane.f32.xlu0 %v1414
    %v1416 = vpop.xlane.xlu0 %1415
    %v1417 = vsel %vm56, %v1393, -inf
    %1418 = vmax.xlane.f32.xlu0 %v1417
    %v1419 = vpop.xlane.xlu0 %1418
    %v1420 = vsub.f32 %v1240, %v1398
    %v1421 = vsub.f32 %v1243, %v1401
    %v1422 = vsub.f32 %v1290, %v1404
    %v1423 = vsub.f32 %v1293, %v1407
    %v1424 = vsub.f32 %v1340, %v1410
    %v1425 = vsub.f32 %v1343, %v1413
    %v1426 = vsub.f32 %v1390, %v1416
    %v1427 = vsub.f32 %v1393, %v1419
    %v1428 = vmul.f32 %v1420, 1.442695
    %v1429 = vpow.pop %v1428
    %v1430 = vmul.f32 %v1421, 1.442695
    %v1431 = vpow.pop %v1430
    %v1432 = vmul.f32 %v1422, 1.442695
    %v1433 = vpow.pop %v1432
    %v1434 = vmul.f32 %v1423, 1.442695
    %v1435 = vpow.pop %v1434
    %v1436 = vmul.f32 %v1424, 1.442695
    %v1437 = vpow.pop %v1436
    %v1438 = vmul.f32 %v1425, 1.442695
    %v1439 = vpow.pop %v1438
    %v1440 = vmul.f32 %v1426, 1.442695
    %v1441 = vpow.pop %v1440
    %v1442 = vmul.f32 %v1427, 1.442695
    %v1443 = vpow.pop %v1442
    %v1444 = vsel %vm56, %v1429, 0.0
    %1445 = vadd.xlane.f32.xlu0 %v1444
    %v1446 = vpop.xlane.xlu0 %1445
    %v1447 = vsel %vm56, %v1431, 0.0
    %1448 = vadd.xlane.f32.xlu0 %v1447
    %v1449 = vpop.xlane.xlu0 %1448
    %v1450 = vsel %vm56, %v1433, 0.0
    %1451 = vadd.xlane.f32.xlu0 %v1450
    %v1452 = vpop.xlane.xlu0 %1451
    %v1453 = vsel %vm56, %v1435, 0.0
    %1454 = vadd.xlane.f32.xlu0 %v1453
    %v1455 = vpop.xlane.xlu0 %1454
    %v1456 = vsel %vm56, %v1437, 0.0
    %1457 = vadd.xlane.f32.xlu0 %v1456
    %v1458 = vpop.xlane.xlu0 %1457
    %v1459 = vsel %vm56, %v1439, 0.0
    %1460 = vadd.xlane.f32.xlu0 %v1459
    %v1461 = vpop.xlane.xlu0 %1460
    %v1462 = vsel %vm56, %v1441, 0.0
    %1463 = vadd.xlane.f32.xlu0 %v1462
    %v1464 = vpop.xlane.xlu0 %1463
    %v1465 = vsel %vm56, %v1443, 0.0
    %1466 = vadd.xlane.f32.xlu0 %v1465
    %v1467 = vpop.xlane.xlu0 %1466
    %v1468 = vrcp.pop %v1446
    %v1469 = vmul.f32 %v1429, %v1468
    %v1470 = vrcp.pop %v1449
    %v1471 = vmul.f32 %v1431, %v1470
    %v1472 = vrcp.pop %v1452
    %v1473 = vmul.f32 %v1433, %v1472
    %v1474 = vrcp.pop %v1455
    %v1475 = vmul.f32 %v1435, %v1474
    %v1476 = vrcp.pop %v1458
    %v1477 = vmul.f32 %v1437, %v1476
    %v1478 = vrcp.pop %v1461
    %v1479 = vmul.f32 %v1439, %v1478
    %v1480 = vrcp.pop %v1464
    %v1481 = vmul.f32 %v1441, %v1480
    %v1482 = vrcp.pop %v1467
    %v1483 = vmul.f32 %v1443, %v1482
    %v1484 = vpack.c.bf16 %v1471, %v1469
    %v1485 = vpack.c.bf16 %v1475, %v1473
    %v1486 = vpack.c.bf16 %v1479, %v1477
    %v1487 = vpack.c.bf16 %v1483, %v1481
    %1488 = vrot.lane.b32.xlu0 %v1192, 64
    %v1489 = vpop.permute.xlu0 %1488
    %v1492 = vsel %vm56, %v1484, 0
    %1494 = vmatprep.subr.bf16.mxu0 0
    %1495 = vmatpush1.bf16.msra.mxu0 0
    %1496 = vmatprep.subr.bf16.mxu0 0
    %1497 = vmatpush1.bf16.msra.mxu0 0
    %1498 = vmatprep.subr.bf16.mxu0 0
    %1499 = vmatpush1.bf16.msra.mxu0 0
    %1500 = vmatprep.subr.bf16.mxu0 0
    %1501 = vmatpush1.bf16.msra.mxu0 0
    %1502 = vmatprep.subr.bf16.mxu0 0
    %1503 = vmatpush1.bf16.msra.mxu0 0
    %1504 = vmatprep.subr.bf16.mxu0 0
    %1505 = vmatpush1.bf16.msra.mxu0 0
    %1506 = vmatprep.subr.bf16.mxu0 0
    %1507 = vmatpush1.bf16.msra.mxu0 0
    %1508 = vmatprep.subr.bf16.mxu0 0
    %1509 = vmatpush1.bf16.msra.mxu0 %v1489
    %1510 = vmatprep.subr.bf16.mxu0 0
    %1511 = vmatpush2.bf16.msra.mxu0 0
    %1512 = vmatprep.subr.bf16.mxu0 0
    %1513 = vmatpush2.bf16.msra.mxu0 0
    %1514 = vmatprep.subr.bf16.mxu0 0
    %1515 = vmatpush2.bf16.msra.mxu0 0
    %1516 = vmatprep.subr.bf16.mxu0 0
    %1517 = vmatpush2.bf16.msra.mxu0 0
    %1518 = vmatprep.subr.bf16.mxu0 0
    %1519 = vmatpush2.bf16.msra.mxu0 0
    %1520 = vmatprep.subr.bf16.mxu0 0
    %1521 = vmatpush2.bf16.msra.mxu0 0
    %1522 = vmatprep.subr.bf16.mxu0 0
    %1523 = vmatpush2.bf16.msra.mxu0 0
    %1524 = vmatprep.subr.bf16.mxu0 0
    %1525 = vmatpush2.bf16.msra.mxu0 0
    %1526 = vmatprep.mubr.bf16.mxu0 0
    %1527 = vmatmul.mubr.bf16.gmra.mxu0 %v1492
    %v1528 = vpop.f32.mrf.mxu0
    %v1529 = vadd.f32 0.0, %v1528
    %v1530 = vpop.f32.mrf.mxu0
    %v1531 = vpop.f32.mrf.mxu0
    %v1532 = vadd.f32 0.0, %v1531
    %v1533 = vpop.f32.mrf.mxu0
    %1534 = vdwg.mxu0
    %1535 = vrot.lane.b32.xlu0 %v1193, 64
    %v1536 = vpop.permute.xlu0 %1535
    %v1539 = vsel %vm56, %v1485, 0
    %1541 = vmatprep.subr.bf16.mxu0 0
    %1542 = vmatpush1.bf16.msra.mxu0 0
    %1543 = vmatprep.subr.bf16.mxu0 0
    %1544 = vmatpush1.bf16.msra.mxu0 0
    %1545 = vmatprep.subr.bf16.mxu0 0
    %1546 = vmatpush1.bf16.msra.mxu0 0
    %1547 = vmatprep.subr.bf16.mxu0 0
    %1548 = vmatpush1.bf16.msra.mxu0 0
    %1549 = vmatprep.subr.bf16.mxu0 0
    %1550 = vmatpush1.bf16.msra.mxu0 0
    %1551 = vmatprep.subr.bf16.mxu0 0
    %1552 = vmatpush1.bf16.msra.mxu0 0
    %1553 = vmatprep.subr.bf16.mxu0 0
    %1554 = vmatpush1.bf16.msra.mxu0 0
    %1555 = vmatprep.subr.bf16.mxu0 0
    %1556 = vmatpush1.bf16.msra.mxu0 %v1536
    %1557 = vmatprep.subr.bf16.mxu0 0
    %1558 = vmatpush2.bf16.msra.mxu0 0
    %1559 = vmatprep.subr.bf16.mxu0 0
    %1560 = vmatpush2.bf16.msra.mxu0 0
    %1561 = vmatprep.subr.bf16.mxu0 0
    %1562 = vmatpush2.bf16.msra.mxu0 0
    %1563 = vmatprep.subr.bf16.mxu0 0
    %1564 = vmatpush2.bf16.msra.mxu0 0
    %1565 = vmatprep.subr.bf16.mxu0 0
    %1566 = vmatpush2.bf16.msra.mxu0 0
    %1567 = vmatprep.subr.bf16.mxu0 0
    %1568 = vmatpush2.bf16.msra.mxu0 0
    %1569 = vmatprep.subr.bf16.mxu0 0
    %1570 = vmatpush2.bf16.msra.mxu0 0
    %1571 = vmatprep.subr.bf16.mxu0 0
    %1572 = vmatpush2.bf16.msra.mxu0 0
    %1573 = vmatprep.mubr.bf16.mxu0 0
    %1574 = vmatmul.mubr.bf16.gmra.mxu0 %v1539
    %v1575 = vpop.f32.mrf.mxu0
    %v1576 = vadd.f32 0.0, %v1575
    %v1577 = vpop.f32.mrf.mxu0
    %v1578 = vpop.f32.mrf.mxu0
    %v1579 = vadd.f32 0.0, %v1578
    %v1580 = vpop.f32.mrf.mxu0
    %1581 = vdwg.mxu0
    %1582 = vrot.lane.b32.xlu0 %v1194, 64
    %v1583 = vpop.permute.xlu0 %1582
    %v1586 = vsel %vm56, %v1486, 0
    %1588 = vmatprep.subr.bf16.mxu0 0
    %1589 = vmatpush1.bf16.msra.mxu0 0
    %1590 = vmatprep.subr.bf16.mxu0 0
    %1591 = vmatpush1.bf16.msra.mxu0 0
    %1592 = vmatprep.subr.bf16.mxu0 0
    %1593 = vmatpush1.bf16.msra.mxu0 0
    %1594 = vmatprep.subr.bf16.mxu0 0
    %1595 = vmatpush1.bf16.msra.mxu0 0
    %1596 = vmatprep.subr.bf16.mxu0 0
    %1597 = vmatpush1.bf16.msra.mxu0 0
    %1598 = vmatprep.subr.bf16.mxu0 0
    %1599 = vmatpush1.bf16.msra.mxu0 0
    %1600 = vmatprep.subr.bf16.mxu0 0
    %1601 = vmatpush1.bf16.msra.mxu0 0
    %1602 = vmatprep.subr.bf16.mxu0 0
    %1603 = vmatpush1.bf16.msra.mxu0 %v1583
    %1604 = vmatprep.subr.bf16.mxu0 0
    %1605 = vmatpush2.bf16.msra.mxu0 0
    %1606 = vmatprep.subr.bf16.mxu0 0
    %1607 = vmatpush2.bf16.msra.mxu0 0
    %1608 = vmatprep.subr.bf16.mxu0 0
    %1609 = vmatpush2.bf16.msra.mxu0 0
    %1610 = vmatprep.subr.bf16.mxu0 0
    %1611 = vmatpush2.bf16.msra.mxu0 0
    %1612 = vmatprep.subr.bf16.mxu0 0
    %1613 = vmatpush2.bf16.msra.mxu0 0
    %1614 = vmatprep.subr.bf16.mxu0 0
    %1615 = vmatpush2.bf16.msra.mxu0 0
    %1616 = vmatprep.subr.bf16.mxu0 0
    %1617 = vmatpush2.bf16.msra.mxu0 0
    %1618 = vmatprep.subr.bf16.mxu0 0
    %1619 = vmatpush2.bf16.msra.mxu0 0
    %1620 = vmatprep.mubr.bf16.mxu0 0
    %1621 = vmatmul.mubr.bf16.gmra.mxu0 %v1586
    %v1622 = vpop.f32.mrf.mxu0
    %v1623 = vadd.f32 0.0, %v1622
    %v1624 = vpop.f32.mrf.mxu0
    %v1625 = vpop.f32.mrf.mxu0
    %v1626 = vadd.f32 0.0, %v1625
    %v1627 = vpop.f32.mrf.mxu0
    %1628 = vdwg.mxu0
    %1629 = vrot.lane.b32.xlu0 %v1195, 64
    %v1630 = vpop.permute.xlu0 %1629
    %v1633 = vsel %vm56, %v1487, 0
    %1635 = vmatprep.subr.bf16.mxu0 0
    %1636 = vmatpush1.bf16.msra.mxu0 0
    %1637 = vmatprep.subr.bf16.mxu0 0
    %1638 = vmatpush1.bf16.msra.mxu0 0
    %1639 = vmatprep.subr.bf16.mxu0 0
    %1640 = vmatpush1.bf16.msra.mxu0 0
    %1641 = vmatprep.subr.bf16.mxu0 0
    %1642 = vmatpush1.bf16.msra.mxu0 0
    %1643 = vmatprep.subr.bf16.mxu0 0
    %1644 = vmatpush1.bf16.msra.mxu0 0
    %1645 = vmatprep.subr.bf16.mxu0 0
    %1646 = vmatpush1.bf16.msra.mxu0 0
    %1647 = vmatprep.subr.bf16.mxu0 0
    %1648 = vmatpush1.bf16.msra.mxu0 0
    %1649 = vmatprep.subr.bf16.mxu0 0
    %1650 = vmatpush1.bf16.msra.mxu0 %v1630
    %1651 = vmatprep.subr.bf16.mxu0 0
    %1652 = vmatpush2.bf16.msra.mxu0 0
    %1653 = vmatprep.subr.bf16.mxu0 0
    %1654 = vmatpush2.bf16.msra.mxu0 0
    %1655 = vmatprep.subr.bf16.mxu0 0
    %1656 = vmatpush2.bf16.msra.mxu0 0
    %1657 = vmatprep.subr.bf16.mxu0 0
    %1658 = vmatpush2.bf16.msra.mxu0 0
    %1659 = vmatprep.subr.bf16.mxu0 0
    %1660 = vmatpush2.bf16.msra.mxu0 0
    %1661 = vmatprep.subr.bf16.mxu0 0
    %1662 = vmatpush2.bf16.msra.mxu0 0
    %1663 = vmatprep.subr.bf16.mxu0 0
    %1664 = vmatpush2.bf16.msra.mxu0 0
    %1665 = vmatprep.subr.bf16.mxu0 0
    %1666 = vmatpush2.bf16.msra.mxu0 0
    %1667 = vmatprep.mubr.bf16.mxu0 0
    %1668 = vmatmul.mubr.bf16.gmra.mxu0 %v1633
    %v1669 = vpop.f32.mrf.mxu0
    %v1670 = vadd.f32 0.0, %v1669
    %v1671 = vpop.f32.mrf.mxu0
    %v1672 = vpop.f32.mrf.mxu0
    %v1673 = vadd.f32 0.0, %v1672
    %v1674 = vpop.f32.mrf.mxu0
    %1675 = vdwg.mxu0
    %1678 = vrot.lane.b32.xlu0 %v1576, 8
    %v1679 = vpop.permute.xlu0 %1678
    %1680 = vrot.lane.b32.xlu0 %v1579, 8
    %v1681 = vpop.permute.xlu0 %1680
    %1686 = vrot.lane.b32.xlu0 %v1623, 16
    %v1687 = vpop.permute.xlu0 %1686
    %1688 = vrot.lane.b32.xlu0 %v1626, 16
    %v1689 = vpop.permute.xlu0 %1688
    %1694 = vrot.lane.b32.xlu0 %v1670, 24
    %v1695 = vpop.permute.xlu0 %1694
    %1696 = vrot.lane.b32.xlu0 %v1673, 24
    %v1697 = vpop.permute.xlu0 %1696
    %v1700 = vsel %vm244, %v1529, %v1679
    %v1701 = vsel %vm244, %v1532, %v1681
    %v1702 = vsel %vm56, %v1700, %v1687
    %v1703 = vsel %vm56, %v1701, %v1689
    %v1704 = vsel %vm750, %v1702, %v1695
    %v1705 = vsel %vm750, %v1703, %v1697
    %v1706 = vld [vmem:[#allocation5 + $0x88] sm:$0xf]
    %v1707 = vld [vmem:[#allocation5 + $0x8c] sm:$0xf]
    %v1708 = vld [vmem:[#allocation5 + $0x90] sm:$0xf]
    %v1709 = vld [vmem:[#allocation5 + $0x94] sm:$0xf]
    %v1710 = vpack.c.bf16 %v1705, %v1704
    %v1711 = vlaneseq
    %v1712 = vshrl.u32 %v1711, 7
    %v1713 = vsub.s32 0, %v1712
    %v1714 = vrot.slane %v1060, %v1713
    %v1719 = vunpack.c.l.b16 %v1706
    %v1720 = vunpack.c.l.b16 %v1707
    %v1721 = vunpack.c.l.b16 %v1708
    %v1722 = vunpack.c.l.b16 %v1709
    %v1723 = vpack.c.b16 %v1720, %v1719
    %v1724 = vpack.c.b16 %v1722, %v1721
    %v1728 = vsel %vm109, %v1710, 0
    %1730 = vmatprep.subr.bf16.mxu0 0
    %1731 = vmatpush1.bf16.msra.mxu0 0
    %1732 = vmatprep.subr.bf16.mxu0 0
    %1733 = vmatpush1.bf16.msra.mxu0 0
    %1734 = vmatprep.subr.bf16.mxu0 0
    %1735 = vmatpush1.bf16.msra.mxu0 0
    %1736 = vmatprep.subr.bf16.mxu0 0
    %1737 = vmatpush1.bf16.msra.mxu0 0
    %1738 = vmatprep.subr.bf16.mxu0 0
    %1739 = vmatpush1.bf16.msra.mxu0 0
    %1740 = vmatprep.subr.bf16.mxu0 0
    %1741 = vmatpush1.bf16.msra.mxu0 0
    %1742 = vmatprep.subr.bf16.mxu0 0
    %1743 = vmatpush1.bf16.msra.mxu0 %v1724
    %1744 = vmatprep.subr.bf16.mxu0 0
    %1745 = vmatpush1.bf16.msra.mxu0 %v1723
    %1746 = vmatprep.subr.bf16.mxu0 0
    %1747 = vmatpush2.bf16.msra.mxu0 0
    %1748 = vmatprep.subr.bf16.mxu0 0
    %1749 = vmatpush2.bf16.msra.mxu0 0
    %1750 = vmatprep.subr.bf16.mxu0 0
    %1751 = vmatpush2.bf16.msra.mxu0 0
    %1752 = vmatprep.subr.bf16.mxu0 0
    %1753 = vmatpush2.bf16.msra.mxu0 0
    %1754 = vmatprep.subr.bf16.mxu0 0
    %1755 = vmatpush2.bf16.msra.mxu0 0
    %1756 = vmatprep.subr.bf16.mxu0 0
    %1757 = vmatpush2.bf16.msra.mxu0 0
    %1758 = vmatprep.subr.bf16.mxu0 0
    %1759 = vmatpush2.bf16.msra.mxu0 0
    %1760 = vmatprep.subr.bf16.mxu0 0
    %1761 = vmatpush2.bf16.msra.mxu0 0
    %1762 = vmatprep.mubr.bf16.mxu0 0
    %1763 = vmatmul.mubr.bf16.gmra.mxu0 %v1728
    %v1764 = vpop.f32.mrf.mxu0
    %v1765 = vadd.f32 %v1714, %v1764
    %v1766 = vpop.f32.mrf.mxu0
    %v1767 = vpop.f32.mrf.mxu0
    %v1768 = vadd.f32 %v1714, %v1767
    %v1769 = vpop.f32.mrf.mxu0
    %1770 = vdwg.mxu0
    %v1771 = vadd.f32 %v1105, %v1765
    %v1772 = vadd.f32 %v1106, %v1768
    %v1773 = vsel %vm109, %v1771, 0.0
    %1774 = vadd.xlane.f32.xlu0 %v1773
    %v1775 = vpop.xlane.xlu0 %1774
    %v1776 = vsel %vm109, %v1772, 0.0
    %1777 = vadd.xlane.f32.xlu0 %v1776
    %v1778 = vpop.xlane.xlu0 %1777
    %v1779 = vmul.f32 %v1771, %v1771
    %v1780 = vmul.f32 %v1772, %v1772
    %v1781 = vsel %vm109, %v1779, 0.0
    %1782 = vadd.xlane.f32.xlu0 %v1781
    %v1783 = vpop.xlane.xlu0 %1782
    %v1784 = vsel %vm109, %v1780, 0.0
    %1785 = vadd.xlane.f32.xlu0 %v1784
    %v1786 = vpop.xlane.xlu0 %1785
    %v1787 = vmul.f32 %v1775, 0.03125
    %v1788 = vmul.f32 %v1778, 0.03125
    %v1789 = vmul.f32 %v1783, 0.03125
    %v1790 = vmul.f32 %v1786, 0.03125
    %v1791 = vmul.f32 %v1787, %v1787
    %v1792 = vmul.f32 %v1788, %v1788
    %v1793 = vsub.f32 %v1789, %v1791
    %v1794 = vsub.f32 %v1790, %v1792
    %v1795 = vsub.f32 %v1771, %v1787
    %v1796 = vsub.f32 %v1772, %v1788
    %v1797 = vadd.f32 %v1793, 1e-05
    %v1798 = vadd.f32 %v1794, 1e-05
    %v1799 = vrsqrt.pop %v1797
    %v1800 = vrsqrt.pop %v1798
    %v1801 = vmul.f32 %v1795, %v1799
    %v1802 = vmul.f32 %v1796, %v1800
    %v1803 = vlaneseq
    %v1804 = vshrl.u32 %v1803, 7
    %v1805 = vsub.s32 0, %v1804
    %v1806 = vrot.slane %v1061, %v1805
    %v1807 = vmul.f32 %v1801, %v1806
    %v1808 = vmul.f32 %v1802, %v1806
    %v1809 = vlaneseq
    %v1810 = vshrl.u32 %v1809, 7
    %v1811 = vsub.s32 0, %v1810
    %v1812 = vrot.slane %v1062, %v1811
    %v1813 = vadd.f32 %v1807, %v1812
    %v1814 = vadd.f32 %v1808, %v1812
    %v1815 = vld [vmem:[#allocation5 + $0x98] sm:$0xf]
    %v1816 = vld [vmem:[#allocation5 + $0x9c] sm:$0xf]
    %v1817 = vld [vmem:[#allocation5 + $0xa0] sm:$0xf]
    %v1818 = vld [vmem:[#allocation5 + $0xa4] sm:$0xf]
    %v1819 = vpack.c.bf16 %v1814, %v1813
    %v1820 = vlaneseq
    %v1821 = vshrl.u32 %v1820, 7
    %v1822 = vsub.s32 0, %v1821
    %v1823 = vrot.slane %v1063, %v1822
    %v1828 = vunpack.c.l.b16 %v1815
    %v1829 = vunpack.c.l.b16 %v1816
    %v1830 = vunpack.c.l.b16 %v1817
    %v1831 = vunpack.c.l.b16 %v1818
    %v1832 = vpack.c.b16 %v1829, %v1828
    %v1833 = vpack.c.b16 %v1831, %v1830
    %v1837 = vsel %vm109, %v1819, 0
    %1839 = vmatprep.subr.bf16.mxu0 0
    %1840 = vmatpush1.bf16.msra.mxu0 0
    %1841 = vmatprep.subr.bf16.mxu0 0
    %1842 = vmatpush1.bf16.msra.mxu0 0
    %1843 = vmatprep.subr.bf16.mxu0 0
    %1844 = vmatpush1.bf16.msra.mxu0 0
    %1845 = vmatprep.subr.bf16.mxu0 0
    %1846 = vmatpush1.bf16.msra.mxu0 0
    %1847 = vmatprep.subr.bf16.mxu0 0
    %1848 = vmatpush1.bf16.msra.mxu0 0
    %1849 = vmatprep.subr.bf16.mxu0 0
    %1850 = vmatpush1.bf16.msra.mxu0 0
    %1851 = vmatprep.subr.bf16.mxu0 0
    %1852 = vmatpush1.bf16.msra.mxu0 %v1833
    %1853 = vmatprep.subr.bf16.mxu0 0
    %1854 = vmatpush1.bf16.msra.mxu0 %v1832
    %1855 = vmatprep.subr.bf16.mxu0 0
    %1856 = vmatpush2.bf16.msra.mxu0 0
    %1857 = vmatprep.subr.bf16.mxu0 0
    %1858 = vmatpush2.bf16.msra.mxu0 0
    %1859 = vmatprep.subr.bf16.mxu0 0
    %1860 = vmatpush2.bf16.msra.mxu0 0
    %1861 = vmatprep.subr.bf16.mxu0 0
    %1862 = vmatpush2.bf16.msra.mxu0 0
    %1863 = vmatprep.subr.bf16.mxu0 0
    %1864 = vmatpush2.bf16.msra.mxu0 0
    %1865 = vmatprep.subr.bf16.mxu0 0
    %1866 = vmatpush2.bf16.msra.mxu0 0
    %1867 = vmatprep.subr.bf16.mxu0 0
    %1868 = vmatpush2.bf16.msra.mxu0 0
    %1869 = vmatprep.subr.bf16.mxu0 0
    %1870 = vmatpush2.bf16.msra.mxu0 0
    %1871 = vmatprep.mubr.bf16.mxu0 0
    %1872 = vmatmul.mubr.bf16.gmra.mxu0 %v1837
    %v1873 = vpop.f32.mrf.mxu0
    %v1874 = vadd.f32 %v1823, %v1873
    %v1875 = vpop.f32.mrf.mxu0
    %v1876 = vpop.f32.mrf.mxu0
    %v1877 = vadd.f32 %v1823, %v1876
    %v1878 = vpop.f32.mrf.mxu0
    %1879 = vdwg.mxu0
    %v1880 = vmul.f32 %v1874, 0.5
    %v1881 = vmul.f32 %v1877, 0.5
    %v1882 = vmul.f32 %v1874, %v1874
    %v1883 = vmul.f32 %v1877, %v1877
    %v1884 = vmul.f32 %v1874, %v1882
    %v1885 = vmul.f32 %v1877, %v1883
    %v1886 = vmul.f32 %v1884, 0.044715
    %v1887 = vmul.f32 %v1885, 0.044715
    %v1888 = vadd.f32 %v1874, %v1886
    %v1889 = vadd.f32 %v1877, %v1887
    %v1890 = vmul.f32 %v1888, 0.7978846
    %v1891 = vmul.f32 %v1889, 0.7978846
    %v1892 = vtanh.pop %v1890
    %v1893 = vtanh.pop %v1891
    %v1894 = vadd.f32 %v1892, 1.0
    %v1895 = vadd.f32 %v1893, 1.0
    %v1896 = vmul.f32 %v1880, %v1894
    %v1897 = vmul.f32 %v1881, %v1895
    %v1898 = vld [vmem:[#allocation5 + $0xa8] sm:$0xf]
    %v1899 = vld [vmem:[#allocation5 + $0xac] sm:$0xf]
    %v1900 = vld [vmem:[#allocation5 + $0xb0] sm:$0xf]
    %v1901 = vld [vmem:[#allocation5 + $0xb4] sm:$0xf]
    %v1902 = vld [vmem:[#allocation5 + $0xb8] sm:$0xf]
    %v1903 = vld [vmem:[#allocation5 + $0xbc] sm:$0xf]
    %v1904 = vld [vmem:[#allocation5 + $0xc0] sm:$0xf]
    %v1905 = vld [vmem:[#allocation5 + $0xc4] sm:$0xf]
    %v1906 = vld [vmem:[#allocation5 + $0xc8] sm:$0xf]
    %v1907 = vld [vmem:[#allocation5 + $0xcc] sm:$0xf]
    %v1908 = vld [vmem:[#allocation5 + $0xd0] sm:$0xf]
    %v1909 = vld [vmem:[#allocation5 + $0xd4] sm:$0xf]
    %v1910 = vld [vmem:[#allocation5 + $0xd8] sm:$0xf]
    %v1911 = vld [vmem:[#allocation5 + $0xdc] sm:$0xf]
    %v1912 = vld [vmem:[#allocation5 + $0xe0] sm:$0xf]
    %v1913 = vld [vmem:[#allocation5 + $0xe4] sm:$0xf]
    %v1914 = vpack.c.bf16 %v1897, %v1896
    %v1915 = vlaneseq
    %v1916 = vshrl.u32 %v1915, 7
    %v1917 = vsub.s32 0, %v1916
    %v1918 = vrot.slane %v1064, %v1917
    %v1935 = vunpack.c.l.b16 %v1898
    %v1936 = vunpack.c.l.b16 %v1899
    %v1937 = vunpack.c.l.b16 %v1900
    %v1938 = vunpack.c.l.b16 %v1901
    %v1939 = vunpack.c.l.b16 %v1902
    %v1940 = vunpack.c.l.b16 %v1903
    %v1941 = vunpack.c.l.b16 %v1904
    %v1942 = vunpack.c.l.b16 %v1905
    %v1943 = vunpack.c.l.b16 %v1906
    %v1944 = vunpack.c.l.b16 %v1907
    %v1945 = vunpack.c.l.b16 %v1908
    %v1946 = vunpack.c.l.b16 %v1909
    %v1947 = vunpack.c.l.b16 %v1910
    %v1948 = vunpack.c.l.b16 %v1911
    %v1949 = vunpack.c.l.b16 %v1912
    %v1950 = vunpack.c.l.b16 %v1913
    %v1951 = vpack.c.b16 %v1936, %v1935
    %v1952 = vpack.c.b16 %v1938, %v1937
    %v1953 = vpack.c.b16 %v1940, %v1939
    %v1954 = vpack.c.b16 %v1942, %v1941
    %v1955 = vpack.c.b16 %v1944, %v1943
    %v1956 = vpack.c.b16 %v1946, %v1945
    %v1957 = vpack.c.b16 %v1948, %v1947
    %v1958 = vpack.c.b16 %v1950, %v1949
    %1967 = vmatprep.subr.bf16.mxu0 0
    %1968 = vmatpush1.bf16.msra.mxu0 %v1958
    %1969 = vmatprep.subr.bf16.mxu0 0
    %1970 = vmatpush1.bf16.msra.mxu0 %v1957
    %1971 = vmatprep.subr.bf16.mxu0 0
    %1972 = vmatpush1.bf16.msra.mxu0 %v1956
    %1973 = vmatprep.subr.bf16.mxu0 0
    %1974 = vmatpush1.bf16.msra.mxu0 %v1955
    %1975 = vmatprep.subr.bf16.mxu0 0
    %1976 = vmatpush1.bf16.msra.mxu0 %v1954
    %1977 = vmatprep.subr.bf16.mxu0 0
    %1978 = vmatpush1.bf16.msra.mxu0 %v1953
    %1979 = vmatprep.subr.bf16.mxu0 0
    %1980 = vmatpush1.bf16.msra.mxu0 %v1952
    %1981 = vmatprep.subr.bf16.mxu0 0
    %1982 = vmatpush1.bf16.msra.mxu0 %v1951
    %1983 = vmatprep.subr.bf16.mxu0 0
    %1984 = vmatpush2.bf16.msra.mxu0 0
    %1985 = vmatprep.subr.bf16.mxu0 0
    %1986 = vmatpush2.bf16.msra.mxu0 0
    %1987 = vmatprep.subr.bf16.mxu0 0
    %1988 = vmatpush2.bf16.msra.mxu0 0
    %1989 = vmatprep.subr.bf16.mxu0 0
    %1990 = vmatpush2.bf16.msra.mxu0 0
    %1991 = vmatprep.subr.bf16.mxu0 0
    %1992 = vmatpush2.bf16.msra.mxu0 0
    %1993 = vmatprep.subr.bf16.mxu0 0
    %1994 = vmatpush2.bf16.msra.mxu0 0
    %1995 = vmatprep.subr.bf16.mxu0 0
    %1996 = vmatpush2.bf16.msra.mxu0 0
    %1997 = vmatprep.subr.bf16.mxu0 0
    %1998 = vmatpush2.bf16.msra.mxu0 0
    %1999 = vmatprep.mubr.bf16.mxu0 0
    %2000 = vmatmul.mubr.bf16.gmra.mxu0 %v1914
    %v2001 = vpop.f32.mrf.mxu0
    %v2002 = vadd.f32 %v1918, %v2001
    %v2003 = vpop.f32.mrf.mxu0
    %v2004 = vpop.f32.mrf.mxu0
    %v2005 = vadd.f32 %v1918, %v2004
    %v2006 = vpop.f32.mrf.mxu0
    %2007 = vdwg.mxu0
    %v2008 = vadd.f32 %v1771, %v2002
    %v2009 = vadd.f32 %v1772, %v2005
    %v2010 = vld [vmem:[#allocation2 + $0x40] sm:$0x1]
    %v2011 = vld [vmem:[#allocation2 + $0x41] sm:$0x1]
    %v2012 = vsel %vm109, %v2008, 0.0
    %2013 = vadd.xlane.f32.xlu0 %v2012
    %v2014 = vpop.xlane.xlu0 %2013
    %v2015 = vsel %vm109, %v2009, 0.0
    %2016 = vadd.xlane.f32.xlu0 %v2015
    %v2017 = vpop.xlane.xlu0 %2016
    %v2018 = vmul.f32 %v2008, %v2008
    %v2019 = vmul.f32 %v2009, %v2009
    %v2020 = vsel %vm109, %v2018, 0.0
    %2021 = vadd.xlane.f32.xlu0 %v2020
    %v2022 = vpop.xlane.xlu0 %2021
    %v2023 = vsel %vm109, %v2019, 0.0
    %2024 = vadd.xlane.f32.xlu0 %v2023
    %v2025 = vpop.xlane.xlu0 %2024
    %v2026 = vmul.f32 %v2014, 0.03125
    %v2027 = vmul.f32 %v2017, 0.03125
    %v2028 = vmul.f32 %v2022, 0.03125
    %v2029 = vmul.f32 %v2025, 0.03125
    %v2030 = vmul.f32 %v2026, %v2026
    %v2031 = vmul.f32 %v2027, %v2027
    %v2032 = vsub.f32 %v2028, %v2030
    %v2033 = vsub.f32 %v2029, %v2031
    %v2034 = vsub.f32 %v2008, %v2026
    %v2035 = vsub.f32 %v2009, %v2027
    %v2036 = vadd.f32 %v2032, 1e-05
    %v2037 = vadd.f32 %v2033, 1e-05
    %v2038 = vrsqrt.pop %v2036
    %v2039 = vrsqrt.pop %v2037
    %v2040 = vmul.f32 %v2034, %v2038
    %v2041 = vmul.f32 %v2035, %v2039
    %v2042 = vlaneseq
    %v2043 = vshrl.u32 %v2042, 7
    %v2044 = vsub.s32 0, %v2043
    %v2045 = vrot.slane %v2010, %v2044
    %v2046 = vmul.f32 %v2040, %v2045
    %v2047 = vmul.f32 %v2041, %v2045
    %v2048 = vlaneseq
    %v2049 = vshrl.u32 %v2048, 7
    %v2050 = vsub.s32 0, %v2049
    %v2051 = vrot.slane %v2011, %v2050
    %v2052 = vadd.f32 %v2046, %v2051
    %v2053 = vadd.f32 %v2047, %v2051
    %v2054 = vld [vmem:[#allocation5 + $0xe8] sm:$0xf]
    %v2055 = vld [vmem:[#allocation5 + $0xec] sm:$0xf]
    %v2056 = vld [vmem:[#allocation5 + $0xf0] sm:$0xf]
    %v2057 = vld [vmem:[#allocation5 + $0xf4] sm:$0xf]
    %v2058 = vpack.c.bf16 %v2053, %v2052
    %v2063 = vunpack.c.l.b16 %v2054
    %v2064 = vunpack.c.l.b16 %v2055
    %v2065 = vunpack.c.l.b16 %v2056
    %v2066 = vunpack.c.l.b16 %v2057
    %v2067 = vpack.c.b16 %v2064, %v2063
    %v2068 = vpack.c.b16 %v2066, %v2065
    %v2072 = vsel %vm109, %v2058, 0
    %2074 = vmatprep.subr.bf16.mxu0 0
    %2075 = vmatpush1.bf16.msra.mxu0 0
    %2076 = vmatprep.subr.bf16.mxu0 0
    %2077 = vmatpush1.bf16.msra.mxu0 0
    %2078 = vmatprep.subr.bf16.mxu0 0
    %2079 = vmatpush1.bf16.msra.mxu0 0
    %2080 = vmatprep.subr.bf16.mxu0 0
    %2081 = vmatpush1.bf16.msra.mxu0 0
    %2082 = vmatprep.subr.bf16.mxu0 0
    %2083 = vmatpush1.bf16.msra.mxu0 0
    %2084 = vmatprep.subr.bf16.mxu0 0
    %2085 = vmatpush1.bf16.msra.mxu0 0
    %2086 = vmatprep.subr.bf16.mxu0 0
    %2087 = vmatpush1.bf16.msra.mxu0 %v2068
    %2088 = vmatprep.subr.bf16.mxu0 0
    %2089 = vmatpush1.bf16.msra.mxu0 %v2067
    %2090 = vmatprep.subr.bf16.mxu0 0
    %2091 = vmatpush2.bf16.msra.mxu0 0
    %2092 = vmatprep.subr.bf16.mxu0 0
    %2093 = vmatpush2.bf16.msra.mxu0 0
    %2094 = vmatprep.subr.bf16.mxu0 0
    %2095 = vmatpush2.bf16.msra.mxu0 0
    %2096 = vmatprep.subr.bf16.mxu0 0
    %2097 = vmatpush2.bf16.msra.mxu0 0
    %2098 = vmatprep.subr.bf16.mxu0 0
    %2099 = vmatpush2.bf16.msra.mxu0 0
    %2100 = vmatprep.subr.bf16.mxu0 0
    %2101 = vmatpush2.bf16.msra.mxu0 0
    %2102 = vmatprep.subr.bf16.mxu0 0
    %2103 = vmatpush2.bf16.msra.mxu0 0
    %2104 = vmatprep.subr.bf16.mxu0 0
    %2105 = vmatpush2.bf16.msra.mxu0 0
    %2106 = vmatprep.mubr.bf16.mxu0 0
    %2107 = vmatmul.mubr.bf16.gmra.mxu0 %v2072
    %v2108 = vpop.f32.mrf.mxu0
    %v2109 = vadd.f32 0.0, %v2108
    %v2110 = vpop.f32.mrf.mxu0
    %v2111 = vpop.f32.mrf.mxu0
    %v2112 = vadd.f32 0.0, %v2111
    %v2113 = vpop.f32.mrf.mxu0
    %2114 = vdwg.mxu0
    %2115 = vst [vmem:[#allocation7] sm:$0xff] %v2109
    %2116 = vst [vmem:[#allocation7 + $0x8] sm:$0xff] %v2112
    // Predicated region
    $region18: #{tpu_custom_call.1} parent=1 // pred_check
      _
    $region19: #{tpu_custom_call.1} parent=1 // pred_check_branch
      %2118 = sbr.rel (0) target = $region21
    $region20: #{tpu_custom_call.1} parent=1 // pred_region
      %s2120 = ssub.s32 256, 256
      %2121 = vsyncadd [#allocation4], %s2120
      %s2122 = sshll.u32 [#allocation7], 4
      %s2123 = int_to_ptr.vmem [resolvable:$true] %s2122
      %2128 = dma.vmem_to_hbm [thread:$0]  %s2123, 256, %s2, [#allocation4], 128, 128, 8
    $region21: #{tpu_custom_call.1} parent=1 // pred_fallthru
      _
    // Predicated region
    $region22: #{tpu_custom_call.1} parent=1 // pred_check
      _
    $region23: #{tpu_custom_call.1} parent=1 // pred_check_branch
      %2130 = sbr.rel (0) target = $region25
    $region24: #{tpu_custom_call.1} parent=1 // pred_region
      %2131 = dma.done [#allocation4], 256
    $region25: #{tpu_custom_call.1} parent=1 // pred_fallthru
      _
    %2132 = vsyncpa [#allocation3], 1
    %2133 = vsyncpa [#allocation6], 1
    %2134 = vsyncpa [#allocation4], 1

</llo_original>
